<compile_context>
chip_gen: v5e
topology: v5e:2x2
jax: 0.10.0
libtpu: 0.0.40
codegen_flags: <defaults>
</compile_context>

<pallas_src>
import jax
import jax.numpy as jnp
from jax.experimental import pallas as pl
from jax.experimental.pallas import tpu as pltpu

# ---------------- hyper-params (small, consistent with the module) ----------
VOCAB = 50
WORD_DIM = 32            # args.w2v_hidden_size
SEQ_LEN = 16
BATCH = 4
FILTERS = [3, 4, 5]
FILTER_NUM = [100, 100, 100]
HIDDEN = sum(FILTER_NUM)     # 300
NCLASSES = 3                 # args.nclasses for 'dil' scenario

# padded (lane-dense) sizes used inside the kernel
FPAD = 128                   # 100 -> 128 filters per branch
HPAD = len(FILTERS) * FPAD   # 384 (>= 300)
CPAD = 128                   # 3 -> 128 classes

_VMEM_SPEC = pl.BlockSpec(memory_space=pltpu.MemorySpace.VMEM)


# ---------------- fused Pallas kernel ----------------------------------------
def _fused_kernel(x_ref, w3_ref, b3_ref, w4_ref, b4_ref, w5_ref, b5_ref,
                  fc1_ref, fc2_ref, wl_ref, bl_ref,
                  pmean_ref, h1m_ref, h2m_ref, y_ref, nrep_ref):
    """conv3/4/5 + ReLU + maxpool -> fc1 -> relu -> fc2 -> relu -> last (+norm).

    x_ref:  (B, S, D) f32 embeddings.
    wK_ref: (K*D, FPAD) bf16 im2col conv weight; bK_ref: (1, FPAD) f32 bias.
    fc1/fc2: (HPAD, HPAD) bf16; wl: (HPAD, CPAD) bf16; bl: (1, CPAD) f32.
    Outputs: pooled-mean (1,HPAD), h1-mean (1,HPAD), h2-mean (1,HPAD),
             y (B,CPAD), normalized rep (B,HPAD) -- all f32, lane-dense.
    """
    x = x_ref[...]                                   # (B, S, D) f32
    B, S, D = x.shape

    pooled = []
    for K, w_ref, b_ref in ((3, w3_ref, b3_ref),
                            (4, w4_ref, b4_ref),
                            (5, w5_ref, b5_ref)):
        L = S - K + 1
        # im2col: row (b, t) = [x[b, t, :], x[b, t+1, :], ..., x[b, t+K-1, :]]
        cols = jnp.concatenate([x[:, k:k + L, :] for k in range(K)], axis=-1)
        xk = cols.reshape(B * L, K * D).astype(jnp.bfloat16)
        acc = jnp.dot(xk, w_ref[...], preferred_element_type=jnp.float32)
        acc = jnp.maximum(acc + b_ref[...], 0.0)      # bias + ReLU (padded cols stay 0)
        pooled.append(jnp.max(acc.reshape(B, L, FPAD), axis=1))  # max_pool1d over time
    h = jnp.concatenate(pooled, axis=-1)              # (B, HPAD) f32
    pmean_ref[...] = jnp.mean(h, axis=0, keepdims=True)

    h1 = jnp.maximum(jnp.dot(h.astype(jnp.bfloat16), fc1_ref[...],
                             preferred_element_type=jnp.float32), 0.0)
    h1m_ref[...] = jnp.mean(h1, axis=0, keepdims=True)

    h2 = jnp.maximum(jnp.dot(h1.astype(jnp.bfloat16), fc2_ref[...],
                             preferred_element_type=jnp.float32), 0.0)
    h2m_ref[...] = jnp.mean(h2, axis=0, keepdims=True)

    # TODO(synk): nn.Dropout(0.5) is identity here (eval-mode forward semantics).
    y_ref[...] = (jnp.dot(h2.astype(jnp.bfloat16), wl_ref[...],
                          preferred_element_type=jnp.float32) + bl_ref[...])

    # F.normalize(h, dim=1) with eps=1e-12 (padded cols are zero -> same norm).
    ssq = jnp.sum(h2 * h2, axis=1, keepdims=True)
    nrep_ref[...] = h2 * jax.lax.rsqrt(jnp.maximum(ssq, 1e-24))


def _cost_estimate(B, S, D):
    flops = 0
    bytes_accessed = 4 * B * S * D
    for K in FILTERS:
        L = S - K + 1
        flops += 2 * B * L * (K * D) * FPAD
        bytes_accessed += 2 * K * D * FPAD + 4 * FPAD
    flops += 2 * B * HPAD * HPAD * 2 + 2 * B * HPAD * CPAD
    bytes_accessed += 2 * (2 * HPAD * HPAD + HPAD * CPAD) + 4 * CPAD
    bytes_accessed += 4 * (3 * HPAD + B * CPAD + B * HPAD)
    return pl.CostEstimate(flops=flops, transcendentals=B,
                           bytes_accessed=bytes_accessed)


# ---------------- forward wrapper --------------------------------------------
def net_forward(params, term, sentence):
    """Mirrors Net.forward (scenario='dil'). `term` is unused, as in PyTorch."""
    del term
    emb = params["embeddings"]
    # Frozen embedding lookup (no grad) -- kept as XLA gather glue.
    seq = jnp.take(emb, sentence, axis=0).astype(jnp.float32)      # (B, S, D)
    B, S, D = seq.shape
    kp = params["kernel"]

    pmean, h1m, h2m, y_pad, nrep_pad = pl.pallas_call(
        _fused_kernel,
        out_shape=(
            jax.ShapeDtypeStruct((1, HPAD), jnp.float32),   # mean of pooled (padded)
            jax.ShapeDtypeStruct((1, HPAD), jnp.float32),   # mean of h1 (padded)
            jax.ShapeDtypeStruct((1, HPAD), jnp.float32),   # mean of h2 (padded)
            jax.ShapeDtypeStruct((B, CPAD), jnp.float32),   # y (padded classes)
            jax.ShapeDtypeStruct((B, HPAD), jnp.float32),   # normalized rep (padded)
        ),
        in_specs=[_VMEM_SPEC] * 11,
        out_specs=(_VMEM_SPEC,) * 5,
        cost_estimate=_cost_estimate(B, S, D),
    )(seq, kp["w3"], kp["b3"], kp["w4"], kp["b4"], kp["w5"], kp["b5"],
      kp["fc1"], kp["fc2"], kp["last_w"], kp["last_b"])

    x_list = [jnp.mean(seq.reshape(B, 1, S, D), axis=0, keepdims=True)]
    for i, f in enumerate(FILTER_NUM):
        x_list.append(pmean[:, i * FPAD:i * FPAD + f])              # (1, 100)
    h_list = [h1m[:, :HIDDEN], h2m[:, :HIDDEN]]
    return {
        "y": y_pad[:, :NCLASSES],
        "normalized_pooled_rep": nrep_pad[:, :HIDDEN],
        "x_list": x_list,
        "h_list": h_list,
    }


# ---------------- parameter init + kernel-layout prep ------------------------
def init_params(key):
    """Logical (PyTorch-layout) parameters."""
    ks = jax.random.split(key, 8)
    params = {"embeddings":
              jax.random.normal(ks[0], (VOCAB, WORD_DIM), jnp.float32) * 0.1}
    for i, (K, F_out) in enumerate(zip(FILTERS, FILTER_NUM)):
        # PyTorch Conv2d weight (F, 1, K, D)
        w_pt = jax.random.normal(ks[1 + i], (F_out, 1, K, WORD_DIM),
                                 jnp.float32) * 0.05
        b = (jnp.arange(F_out, dtype=jnp.float32) / F_out - 0.5) * 0.1
        params[f"conv{K}"] = (w_pt, b)
    # PyTorch Linear weight (out, in) used as x @ W.T -> stored (in, out)
    params["fc1"] = jax.random.normal(ks[4], (HIDDEN, HIDDEN), jnp.float32) * 0.03
    params["fc2"] = jax.random.normal(ks[5], (HIDDEN, HIDDEN), jnp.float32) * 0.03
    params["last_w"] = jax.random.normal(ks[6], (HIDDEN, NCLASSES), jnp.float32) * 0.05
    params["last_b"] = jax.random.normal(ks[7], (1, NCLASSES), jnp.float32) * 0.05
    return params


def prepare_kernel_params(params):
    """One-time layout prep: im2col conv weights, lane padding, bf16 cast."""
    kp = {}
    for K, F_out in zip(FILTERS, FILTER_NUM):
        w_pt, b = params[f"conv{K}"]
        # (F, 1, K, D) -> (K, D, F) -> (K*D, F): row k*D+d multiplies x[b, t+k, d]
        w_col = jnp.transpose(w_pt[:, 0], (1, 2, 0)).reshape(K * WORD_DIM, F_out)
        kp[f"w{K}"] = jnp.pad(w_col, ((0, 0), (0, FPAD - F_out))).astype(jnp.bfloat16)
        kp[f"b{K}"] = jnp.pad(b.reshape(1, F_out), ((0, 0), (0, FPAD - F_out)))
    # fc1: scatter input rows to the padded pooled layout (branch*128 + offset),
    # pad output cols 300 -> 384 with zeros.
    rows = []
    for i, F_out in enumerate(FILTER_NUM):
        lo = sum(FILTER_NUM[:i])
        blk = params["fc1"][lo:lo + F_out, :]
        rows.append(jnp.pad(blk, ((0, FPAD - F_out), (0, 0))))
    fc1p = jnp.concatenate(rows, axis=0)                           # (HPAD, 300)
    kp["fc1"] = jnp.pad(fc1p, ((0, 0), (0, HPAD - HIDDEN))).astype(jnp.bfloat16)
    kp["fc2"] = jnp.pad(params["fc2"],
                        ((0, HPAD - HIDDEN), (0, HPAD - HIDDEN))).astype(jnp.bfloat16)
    kp["last_w"] = jnp.pad(params["last_w"],
                           ((0, HPAD - HIDDEN), (0, CPAD - NCLASSES))).astype(jnp.bfloat16)
    kp["last_b"] = jnp.pad(params["last_b"], ((0, 0), (0, CPAD - NCLASSES)))
    return kp


# ---------------- pure-JAX reference (same bf16/f32 numerics) ----------------
def net_forward_ref(params, sentence):
    emb = params["embeddings"]
    x = jnp.take(emb, sentence, axis=0).astype(jnp.float32)
    B, S, D = x.shape
    xb = x.astype(jnp.bfloat16)
    pooled = []
    for K, F_out in zip(FILTERS, FILTER_NUM):
        w_pt, b = params[f"conv{K}"]
        L = S - K + 1
        w_col = jnp.transpose(w_pt[:, 0], (1, 2, 0)).reshape(K * D, F_out)
        cols = jnp.concatenate([xb[:, k:k + L, :] for k in range(K)],
                               axis=-1).reshape(B * L, K * D)
        acc = jnp.dot(cols, w_col.astype(jnp.bfloat16),
                      preferred_element_type=jnp.float32)
        acc = jnp.maximum(acc + b[None, :], 0.0).reshape(B, L, F_out)
        pooled.append(jnp.max(acc, axis=1))
    h = jnp.concatenate(pooled, axis=1)
    h1 = jnp.maximum(jnp.dot(h.astype(jnp.bfloat16),
                             params["fc1"].astype(jnp.bfloat16),
                             preferred_element_type=jnp.float32), 0.0)
    h2 = jnp.maximum(jnp.dot(h1.astype(jnp.bfloat16),
                             params["fc2"].astype(jnp.bfloat16),
                             preferred_element_type=jnp.float32), 0.0)
    y = jnp.dot(h2.astype(jnp.bfloat16), params["last_w"].astype(jnp.bfloat16),
                preferred_element_type=jnp.float32) + params["last_b"]
    nrep = h2 / jnp.maximum(jnp.sqrt(jnp.sum(h2 * h2, axis=1, keepdims=True)), 1e-12)
    return {"y": y, "nrep": nrep, "h1": h1, "h2": h2, "pooled": pooled}


# ---------------- main --------------------------------------------------------
if __name__ == "__main__":
    key = jax.random.PRNGKey(0)
    pkey, skey, tkey = jax.random.split(key, 3)
    params = init_params(pkey)
    params["kernel"] = prepare_kernel_params(params)

    sentence = jax.random.randint(skey, (BATCH, SEQ_LEN), 0, VOCAB, jnp.int32)
    term = jax.random.randint(tkey, (BATCH, 4), 0, VOCAB, jnp.int32)  # unused in forward

    out = jax.block_until_ready(jax.jit(net_forward)(params, term, sentence))

    # sanity-check against a pure-JAX reference using identical numerics
    ref = net_forward_ref(params, sentence)
    assert out["y"].shape == (BATCH, NCLASSES)
    assert out["normalized_pooled_rep"].shape == (BATCH, HIDDEN)
    assert out["x_list"][0].shape == (1, 1, SEQ_LEN, WORD_DIM)
    assert all(x.shape == (1, f) for x, f in zip(out["x_list"][1:], FILTER_NUM))
    assert all(h.shape == (1, HIDDEN) for h in out["h_list"])

    emb_mean = jnp.mean(
        jnp.take(params["embeddings"], sentence, axis=0)
        .reshape(BATCH, 1, SEQ_LEN, WORD_DIM), axis=0, keepdims=True)
    assert jnp.allclose(out["x_list"][0], emb_mean, atol=1e-3, rtol=1e-3)
    for i, p in enumerate(ref["pooled"]):
        assert jnp.allclose(out["x_list"][1 + i],
                            jnp.mean(p, axis=0, keepdims=True),
                            atol=1e-3, rtol=1e-3)
    assert jnp.allclose(out["h_list"][0], jnp.mean(ref["h1"], 0, keepdims=True),
                        atol=1e-3, rtol=1e-3)
    assert jnp.allclose(out["h_list"][1], jnp.mean(ref["h2"], 0, keepdims=True),
                        atol=1e-3, rtol=1e-3)
    assert jnp.allclose(out["y"], ref["y"], atol=1e-3, rtol=1e-3)
    assert jnp.allclose(out["normalized_pooled_rep"], ref["nrep"],
                        atol=1e-3, rtol=1e-3)

    print("KERNEL_OK")
</pallas_src>

<mosaic_0001>
module attributes {stable_mosaic.version = 11 : i64} {
  func.func @_fused_kernel(%arg0: memref<4x16x32xf32, #tpu.memory_space<vmem>>, %arg1: memref<96x128xbf16, #tpu.memory_space<vmem>>, %arg2: memref<1x128xf32, #tpu.memory_space<vmem>>, %arg3: memref<128x128xbf16, #tpu.memory_space<vmem>>, %arg4: memref<1x128xf32, #tpu.memory_space<vmem>>, %arg5: memref<160x128xbf16, #tpu.memory_space<vmem>>, %arg6: memref<1x128xf32, #tpu.memory_space<vmem>>, %arg7: memref<384x384xbf16, #tpu.memory_space<vmem>>, %arg8: memref<384x384xbf16, #tpu.memory_space<vmem>>, %arg9: memref<384x128xbf16, #tpu.memory_space<vmem>>, %arg10: memref<1x128xf32, #tpu.memory_space<vmem>>, %arg11: memref<1x384xf32, #tpu.memory_space<vmem>>, %arg12: memref<1x384xf32, #tpu.memory_space<vmem>>, %arg13: memref<1x384xf32, #tpu.memory_space<vmem>>, %arg14: memref<4x128xf32, #tpu.memory_space<vmem>>, %arg15: memref<4x384xf32, #tpu.memory_space<vmem>>) attributes {dimension_semantics = [], scalar_prefetch = 0 : i64, scratch_operands = 0 : i64, tpu.core_type = #tpu.core_type<tc>} {
    %c0 = arith.constant 0 : index
    %c0_0 = arith.constant 0 : index
    %c0_1 = arith.constant 0 : index
    %0 = vector.load %arg0[%c0, %c0_0, %c0_1] : memref<4x16x32xf32, #tpu.memory_space<vmem>>, vector<4x16x32xf32>
    %1 = vector.extract_strided_slice %0 {offsets = [0, 0, 0], sizes = [4, 14, 32], strides = [1, 1, 1]} : vector<4x16x32xf32> to vector<4x14x32xf32>
    %2 = vector.extract_strided_slice %0 {offsets = [0, 1, 0], sizes = [4, 14, 32], strides = [1, 1, 1]} : vector<4x16x32xf32> to vector<4x14x32xf32>
    %3 = vector.extract_strided_slice %0 {offsets = [0, 2, 0], sizes = [4, 14, 32], strides = [1, 1, 1]} : vector<4x16x32xf32> to vector<4x14x32xf32>
    %4 = tpu.concatenate %1, %2, %3 in 2 : vector<4x14x32xf32>, vector<4x14x32xf32>, vector<4x14x32xf32> -> vector<4x14x96xf32>
    %5 = vector.shape_cast %4 : vector<4x14x96xf32> to vector<56x96xf32>
    %6 = arith.truncf %5 : vector<56x96xf32> to vector<56x96xbf16>
    %c0_2 = arith.constant 0 : index
    %c0_3 = arith.constant 0 : index
    %7 = vector.load %arg1[%c0_2, %c0_3] : memref<96x128xbf16, #tpu.memory_space<vmem>>, vector<96x128xbf16>
    %cst = arith.constant dense<0.000000e+00> : vector<56x128xf32>
    %8 = tpu.matmul %6, %7, %cst {dimension_numbers = #tpu.dot_dimension_numbers<[1], [0], [0], [1], [0, 0, 1, 1], [], []>} : vector<56x96xbf16>, vector<96x128xbf16>, vector<56x128xf32> -> vector<56x128xf32>
    %c0_4 = arith.constant 0 : index
    %c0_5 = arith.constant 0 : index
    %9 = vector.load %arg2[%c0_4, %c0_5] : memref<1x128xf32, #tpu.memory_space<vmem>>, vector<1x128xf32>
    %10 = vector.broadcast %9 : vector<1x128xf32> to vector<56x128xf32>
    %11 = arith.addf %8, %10 : vector<56x128xf32>
    %cst_6 = arith.constant 0.000000e+00 : f32
    %12 = vector.broadcast %cst_6 : f32 to vector<56x128xf32>
    %13 = arith.maximumf %11, %12 : vector<56x128xf32>
    %14 = vector.shape_cast %13 : vector<56x128xf32> to vector<4x14x128xf32>
    %cst_7 = arith.constant dense<0xFF800000> : vector<4x128xf32>
    %15 = vector.multi_reduction <maximumf>, %14, %cst_7 [1] : vector<4x14x128xf32> to vector<4x128xf32>
    %16 = vector.extract_strided_slice %0 {offsets = [0, 0, 0], sizes = [4, 13, 32], strides = [1, 1, 1]} : vector<4x16x32xf32> to vector<4x13x32xf32>
    %17 = vector.extract_strided_slice %0 {offsets = [0, 1, 0], sizes = [4, 13, 32], strides = [1, 1, 1]} : vector<4x16x32xf32> to vector<4x13x32xf32>
    %18 = vector.extract_strided_slice %0 {offsets = [0, 2, 0], sizes = [4, 13, 32], strides = [1, 1, 1]} : vector<4x16x32xf32> to vector<4x13x32xf32>
    %19 = vector.extract_strided_slice %0 {offsets = [0, 3, 0], sizes = [4, 13, 32], strides = [1, 1, 1]} : vector<4x16x32xf32> to vector<4x13x32xf32>
    %20 = tpu.concatenate %16, %17, %18, %19 in 2 : vector<4x13x32xf32>, vector<4x13x32xf32>, vector<4x13x32xf32>, vector<4x13x32xf32> -> vector<4x13x128xf32>
    %21 = vector.shape_cast %20 : vector<4x13x128xf32> to vector<52x128xf32>
    %22 = arith.truncf %21 : vector<52x128xf32> to vector<52x128xbf16>
    %c0_8 = arith.constant 0 : index
    %c0_9 = arith.constant 0 : index
    %23 = vector.load %arg3[%c0_8, %c0_9] : memref<128x128xbf16, #tpu.memory_space<vmem>>, vector<128x128xbf16>
    %cst_10 = arith.constant dense<0.000000e+00> : vector<52x128xf32>
    %24 = tpu.matmul %22, %23, %cst_10 {dimension_numbers = #tpu.dot_dimension_numbers<[1], [0], [0], [1], [0, 0, 1, 1], [], []>} : vector<52x128xbf16>, vector<128x128xbf16>, vector<52x128xf32> -> vector<52x128xf32>
    %c0_11 = arith.constant 0 : index
    %c0_12 = arith.constant 0 : index
    %25 = vector.load %arg4[%c0_11, %c0_12] : memref<1x128xf32, #tpu.memory_space<vmem>>, vector<1x128xf32>
    %26 = vector.broadcast %25 : vector<1x128xf32> to vector<52x128xf32>
    %27 = arith.addf %24, %26 : vector<52x128xf32>
    %cst_13 = arith.constant 0.000000e+00 : f32
    %28 = vector.broadcast %cst_13 : f32 to vector<52x128xf32>
    %29 = arith.maximumf %27, %28 : vector<52x128xf32>
    %30 = vector.shape_cast %29 : vector<52x128xf32> to vector<4x13x128xf32>
    %cst_14 = arith.constant dense<0xFF800000> : vector<4x128xf32>
    %31 = vector.multi_reduction <maximumf>, %30, %cst_14 [1] : vector<4x13x128xf32> to vector<4x128xf32>
    %32 = vector.extract_strided_slice %0 {offsets = [0, 0, 0], sizes = [4, 12, 32], strides = [1, 1, 1]} : vector<4x16x32xf32> to vector<4x12x32xf32>
    %33 = vector.extract_strided_slice %0 {offsets = [0, 1, 0], sizes = [4, 12, 32], strides = [1, 1, 1]} : vector<4x16x32xf32> to vector<4x12x32xf32>
    %34 = vector.extract_strided_slice %0 {offsets = [0, 2, 0], sizes = [4, 12, 32], strides = [1, 1, 1]} : vector<4x16x32xf32> to vector<4x12x32xf32>
    %35 = vector.extract_strided_slice %0 {offsets = [0, 3, 0], sizes = [4, 12, 32], strides = [1, 1, 1]} : vector<4x16x32xf32> to vector<4x12x32xf32>
    %36 = vector.extract_strided_slice %0 {offsets = [0, 4, 0], sizes = [4, 12, 32], strides = [1, 1, 1]} : vector<4x16x32xf32> to vector<4x12x32xf32>
    %37 = tpu.concatenate %32, %33, %34, %35, %36 in 2 : vector<4x12x32xf32>, vector<4x12x32xf32>, vector<4x12x32xf32>, vector<4x12x32xf32>, vector<4x12x32xf32> -> vector<4x12x160xf32>
    %38 = vector.shape_cast %37 : vector<4x12x160xf32> to vector<48x160xf32>
    %39 = arith.truncf %38 : vector<48x160xf32> to vector<48x160xbf16>
    %c0_15 = arith.constant 0 : index
    %c0_16 = arith.constant 0 : index
    %40 = vector.load %arg5[%c0_15, %c0_16] : memref<160x128xbf16, #tpu.memory_space<vmem>>, vector<160x128xbf16>
    %cst_17 = arith.constant dense<0.000000e+00> : vector<48x128xf32>
    %41 = tpu.matmul %39, %40, %cst_17 {dimension_numbers = #tpu.dot_dimension_numbers<[1], [0], [0], [1], [0, 0, 1, 1], [], []>} : vector<48x160xbf16>, vector<160x128xbf16>, vector<48x128xf32> -> vector<48x128xf32>
    %c0_18 = arith.constant 0 : index
    %c0_19 = arith.constant 0 : index
    %42 = vector.load %arg6[%c0_18, %c0_19] : memref<1x128xf32, #tpu.memory_space<vmem>>, vector<1x128xf32>
    %43 = vector.broadcast %42 : vector<1x128xf32> to vector<48x128xf32>
    %44 = arith.addf %41, %43 : vector<48x128xf32>
    %cst_20 = arith.constant 0.000000e+00 : f32
    %45 = vector.broadcast %cst_20 : f32 to vector<48x128xf32>
    %46 = arith.maximumf %44, %45 : vector<48x128xf32>
    %47 = vector.shape_cast %46 : vector<48x128xf32> to vector<4x12x128xf32>
    %cst_21 = arith.constant dense<0xFF800000> : vector<4x128xf32>
    %48 = vector.multi_reduction <maximumf>, %47, %cst_21 [1] : vector<4x12x128xf32> to vector<4x128xf32>
    %49 = tpu.concatenate %15, %31, %48 in 1 : vector<4x128xf32>, vector<4x128xf32>, vector<4x128xf32> -> vector<4x384xf32>
    %cst_22 = arith.constant dense<0.000000e+00> : vector<384xf32>
    %50 = vector.multi_reduction <add>, %49, %cst_22 [0] : vector<4x384xf32> to vector<384xf32>
    %51 = vector.shape_cast %50 : vector<384xf32> to vector<1x384xf32>
    %cst_23 = arith.constant 4.000000e+00 : f32
    %52 = vector.broadcast %cst_23 : f32 to vector<1x384xf32>
    %53 = arith.divf %51, %52 : vector<1x384xf32>
    %c0_24 = arith.constant 0 : index
    %c0_25 = arith.constant 0 : index
    %54 = vector.load %arg11[%c0_24, %c0_25] : memref<1x384xf32, #tpu.memory_space<vmem>>, vector<1x384xf32>
    tpu.vector_store %arg11[%c0_24, %c0_25], %53 {strides = array<i32>} : memref<1x384xf32, #tpu.memory_space<vmem>>, vector<1x384xf32>,
    %55 = arith.truncf %49 : vector<4x384xf32> to vector<4x384xbf16>
    %c0_26 = arith.constant 0 : index
    %c0_27 = arith.constant 0 : index
    %56 = vector.load %arg7[%c0_26, %c0_27] : memref<384x384xbf16, #tpu.memory_space<vmem>>, vector<384x384xbf16>
    %cst_28 = arith.constant dense<0.000000e+00> : vector<4x384xf32>
    %57 = tpu.matmul %55, %56, %cst_28 {dimension_numbers = #tpu.dot_dimension_numbers<[1], [0], [0], [1], [0, 0, 1, 1], [], []>} : vector<4x384xbf16>, vector<384x384xbf16>, vector<4x384xf32> -> vector<4x384xf32>
    %cst_29 = arith.constant 0.000000e+00 : f32
    %58 = vector.broadcast %cst_29 : f32 to vector<4x384xf32>
    %59 = arith.maximumf %57, %58 : vector<4x384xf32>
    %cst_30 = arith.constant dense<0.000000e+00> : vector<384xf32>
    %60 = vector.multi_reduction <add>, %59, %cst_30 [0] : vector<4x384xf32> to vector<384xf32>
    %61 = vector.shape_cast %60 : vector<384xf32> to vector<1x384xf32>
    %cst_31 = arith.constant 4.000000e+00 : f32
    %62 = vector.broadcast %cst_31 : f32 to vector<1x384xf32>
    %63 = arith.divf %61, %62 : vector<1x384xf32>
    %c0_32 = arith.constant 0 : index
    %c0_33 = arith.constant 0 : index
    %64 = vector.load %arg12[%c0_32, %c0_33] : memref<1x384xf32, #tpu.memory_space<vmem>>, vector<1x384xf32>
    tpu.vector_store %arg12[%c0_32, %c0_33], %63 {strides = array<i32>} : memref<1x384xf32, #tpu.memory_space<vmem>>, vector<1x384xf32>,
    %65 = arith.truncf %59 : vector<4x384xf32> to vector<4x384xbf16>
    %c0_34 = arith.constant 0 : index
    %c0_35 = arith.constant 0 : index
    %66 = vector.load %arg8[%c0_34, %c0_35] : memref<384x384xbf16, #tpu.memory_space<vmem>>, vector<384x384xbf16>
    %cst_36 = arith.constant dense<0.000000e+00> : vector<4x384xf32>
    %67 = tpu.matmul %65, %66, %cst_36 {dimension_numbers = #tpu.dot_dimension_numbers<[1], [0], [0], [1], [0, 0, 1, 1], [], []>} : vector<4x384xbf16>, vector<384x384xbf16>, vector<4x384xf32> -> vector<4x384xf32>
    %cst_37 = arith.constant 0.000000e+00 : f32
    %68 = vector.broadcast %cst_37 : f32 to vector<4x384xf32>
    %69 = arith.maximumf %67, %68 : vector<4x384xf32>
    %cst_38 = arith.constant dense<0.000000e+00> : vector<384xf32>
    %70 = vector.multi_reduction <add>, %69, %cst_38 [0] : vector<4x384xf32> to vector<384xf32>
    %71 = vector.shape_cast %70 : vector<384xf32> to vector<1x384xf32>
    %cst_39 = arith.constant 4.000000e+00 : f32
    %72 = vector.broadcast %cst_39 : f32 to vector<1x384xf32>
    %73 = arith.divf %71, %72 : vector<1x384xf32>
    %c0_40 = arith.constant 0 : index
    %c0_41 = arith.constant 0 : index
    %74 = vector.load %arg13[%c0_40, %c0_41] : memref<1x384xf32, #tpu.memory_space<vmem>>, vector<1x384xf32>
    tpu.vector_store %arg13[%c0_40, %c0_41], %73 {strides = array<i32>} : memref<1x384xf32, #tpu.memory_space<vmem>>, vector<1x384xf32>,
    %75 = arith.truncf %69 : vector<4x384xf32> to vector<4x384xbf16>
    %c0_42 = arith.constant 0 : index
    %c0_43 = arith.constant 0 : index
    %76 = vector.load %arg9[%c0_42, %c0_43] : memref<384x128xbf16, #tpu.memory_space<vmem>>, vector<384x128xbf16>
    %cst_44 = arith.constant dense<0.000000e+00> : vector<4x128xf32>
    %77 = tpu.matmul %75, %76, %cst_44 {dimension_numbers = #tpu.dot_dimension_numbers<[1], [0], [0], [1], [0, 0, 1, 1], [], []>} : vector<4x384xbf16>, vector<384x128xbf16>, vector<4x128xf32> -> vector<4x128xf32>
    %c0_45 = arith.constant 0 : index
    %c0_46 = arith.constant 0 : index
    %78 = vector.load %arg10[%c0_45, %c0_46] : memref<1x128xf32, #tpu.memory_space<vmem>>, vector<1x128xf32>
    %79 = vector.broadcast %78 : vector<1x128xf32> to vector<4x128xf32>
    %80 = arith.addf %77, %79 : vector<4x128xf32>
    %c0_47 = arith.constant 0 : index
    %c0_48 = arith.constant 0 : index
    %81 = vector.load %arg14[%c0_47, %c0_48] : memref<4x128xf32, #tpu.memory_space<vmem>>, vector<4x128xf32>
    tpu.vector_store %arg14[%c0_47, %c0_48], %80 {strides = array<i32>} : memref<4x128xf32, #tpu.memory_space<vmem>>, vector<4x128xf32>,
    %82 = arith.mulf %69, %69 : vector<4x384xf32>
    %cst_49 = arith.constant dense<0.000000e+00> : vector<4xf32>
    %83 = vector.multi_reduction <add>, %82, %cst_49 [1] : vector<4x384xf32> to vector<4xf32>
    %84 = vector.shape_cast %83 : vector<4xf32> to vector<4x1xf32>
    %cst_50 = arith.constant 1.000000e-24 : f32
    %85 = vector.broadcast %cst_50 : f32 to vector<4x1xf32>
    %86 = arith.maximumf %84, %85 : vector<4x1xf32>
    %87 = math.rsqrt %86 : vector<4x1xf32>
    %88 = vector.broadcast %87 : vector<4x1xf32> to vector<4x384xf32>
    %89 = arith.mulf %69, %88 : vector<4x384xf32>
    %c0_51 = arith.constant 0 : index
    %c0_52 = arith.constant 0 : index
    %90 = vector.load %arg15[%c0_51, %c0_52] : memref<4x384xf32, #tpu.memory_space<vmem>>, vector<4x384xf32>
    tpu.vector_store %arg15[%c0_51, %c0_52], %89 {strides = array<i32>} : memref<4x384xf32, #tpu.memory_space<vmem>>, vector<4x384xf32>,
    return
  }
}

</mosaic_0001>

<llo_original>
// kernel: net_forward.1
$region0: #{net_forward.1}
  #allocation0 [shape = 'u32[]', space=smem, size = 0x4, offset = 0x4, fixed_abs, tag = 'smem constant byte address 0x4 - core index']
  #allocation1 [shape = 'u32[72,128]{1,0:T(1,128)}', space=vmem, size = 0x9000, scoped, tag = 'internal scratch']
  %s0 = inlined_call_operand.vmem [shape: f32[4,16,32], index: 0, kind: input, shape index: {}]
  %s1 = inlined_call_operand.hbm [shape: bf16[96,128], index: 1, kind: input, shape index: {}]
  %s2 = inlined_call_operand.vmem [shape: f32[1,128], index: 2, kind: input, shape index: {}]
  %s3 = inlined_call_operand.hbm [shape: bf16[128,128], index: 3, kind: input, shape index: {}]
  %s4 = inlined_call_operand.vmem [shape: f32[1,128], index: 4, kind: input, shape index: {}]
  %s5 = inlined_call_operand.vmem [shape: bf16[160,128], index: 5, kind: input, shape index: {}]
  %s6 = inlined_call_operand.vmem [shape: f32[1,128], index: 6, kind: input, shape index: {}]
  %s7 = inlined_call_operand.vmem [shape: bf16[384,384], index: 7, kind: input, shape index: {}]
  %s8 = inlined_call_operand.hbm [shape: bf16[384,384], index: 8, kind: input, shape index: {}]
  %s9 = inlined_call_operand.vmem [shape: bf16[384,128], index: 9, kind: input, shape index: {}]
  %s10 = inlined_call_operand.vmem [shape: f32[1,128], index: 10, kind: input, shape index: {}]
  %s11 = inlined_call_operand.vmem [shape: f32[1,384], index: 11, kind: output, shape index: {0}]
  %s12 = inlined_call_operand.hbm [shape: f32[1,384], index: 12, kind: output, shape index: {1}]
  %s13 = inlined_call_operand.hbm [shape: f32[1,384], index: 13, kind: output, shape index: {2}]
  %s14 = inlined_call_operand.hbm [shape: f32[4,128], index: 14, kind: output, shape index: {3}]
  %s15 = inlined_call_operand.hbm [shape: f32[4,384], index: 15, kind: output, shape index: {4}]
  %16 = xla_tuple %s11, %s12, %s13, %s14, %s15
  %s17 = sld [smem:[#allocation0]]
  $region98: #{net_forward.1} parent=0
    _
  %s19 = ssub.s32 1, %s17
  %s20 = scalar_select 0, %s19, %s17
  $region1: #{net_forward.1} parent=0
    #allocation2 [shape = 'u8[24576]{0}', space=vmem, size = 0x6000, scoped, tag = 'input window, operand 1, single buffered']
    #allocation3 [shape = 's32[1]{0}', space=sflag, size = 0x4, scoped, tag = 'scoped memory for net_forward.1']
    #allocation4 [shape = 's32[1]{0}', space=sflag, size = 0x4, scoped, tag = 'scoped memory for net_forward.1']
    #allocation5 [shape = 'u8[32768]{0}', space=vmem, size = 0x8000, scoped, tag = 'input window, operand 3, single buffered']
    #allocation6 [shape = 's32[1]{0}', space=sflag, size = 0x4, scoped, tag = 'scoped memory for net_forward.1']
    #allocation7 [shape = 'u8[294912]{0}', space=vmem, size = 0x48000, scoped, tag = 'input window, operand 8, single buffered']
    #allocation8 [shape = 'u8[1536]{0}', space=vmem, size = 0x800, scoped, tag = 'output window, operand 1, single buffered']
    #allocation9 [shape = 'u8[1536]{0}', space=vmem, size = 0x800, scoped, tag = 'output window, operand 2, single buffered']
    #allocation10 [shape = 's32[1]{0}', space=sflag, size = 0x4, scoped, tag = 'scoped memory for net_forward.1']
    #allocation11 [shape = 'u8[2048]{0}', space=vmem, size = 0x800, scoped, tag = 'output window, operand 3, single buffered']
    #allocation12 [shape = 'u8[6144]{0}', space=vmem, size = 0x1800, scoped, tag = 'output window, operand 4, single buffered']
    #allocation13 [shape = 's32[1]{0}', space=sflag, size = 0x4, scoped, tag = 'scoped memory for net_forward.1']
    %21 = vsyncpa [#allocation3], 0
    %22 = vsyncpa [#allocation6], 0
    %23 = vsyncpa [#allocation4], 0
    %24 = vsyncpa [#allocation10], 0
    %25 = vsyncpa [#allocation13], 0
    // Predicated region
    $region2: #{net_forward.1} parent=1 // pred_check
      _
    $region3: #{net_forward.1} parent=1 // pred_check_branch
      %27 = sbr.rel (0) target = $region5
    $region4: #{net_forward.1} parent=1 // pred_region
      _
    $region5: #{net_forward.1} parent=1 // pred_fallthru
      _
    // Predicated region
    $region6: #{net_forward.1} parent=1 // pred_check
      _
    $region7: #{net_forward.1} parent=1 // pred_check_branch
      %29 = sbr.rel (0) target = $region9
    $region8: #{net_forward.1} parent=1 // pred_region
      %31 = vsyncadd [#allocation3], 0
      %s32 = sshll.u32 %s1, 4
      %s33 = int_to_ptr.hbm [resolvable:$true] %s32
      %s34 = sshll.u32 [#allocation2], 4
      %s35 = int_to_ptr.vmem [resolvable:$true] %s34
      %40 = dma.hbm_to_vmem [thread:$0]  %s33, 768, %s35, [#allocation3], 64, 64, 4
    $region9: #{net_forward.1} parent=1 // pred_fallthru
      _
    // Predicated region
    $region10: #{net_forward.1} parent=1 // pred_check
      _
    $region11: #{net_forward.1} parent=1 // pred_check_branch
      %42 = sbr.rel (0) target = $region13
    $region12: #{net_forward.1} parent=1 // pred_region
      _
    $region13: #{net_forward.1} parent=1 // pred_fallthru
      _
    // Predicated region
    $region14: #{net_forward.1} parent=1 // pred_check
      _
    $region15: #{net_forward.1} parent=1 // pred_check_branch
      %44 = sbr.rel (0) target = $region17
    $region16: #{net_forward.1} parent=1 // pred_region
      %46 = vsyncadd [#allocation6], 0
      %s47 = sshll.u32 %s3, 4
      %s48 = int_to_ptr.hbm [resolvable:$true] %s47
      %s49 = sshll.u32 [#allocation5], 4
      %s50 = int_to_ptr.vmem [resolvable:$true] %s49
      %55 = dma.hbm_to_vmem [thread:$0]  %s48, 1024, %s50, [#allocation6], 64, 64, 4
    $region17: #{net_forward.1} parent=1 // pred_fallthru
      _
    // Predicated region
    $region18: #{net_forward.1} parent=1 // pred_check
      _
    $region19: #{net_forward.1} parent=1 // pred_check_branch
      %57 = sbr.rel (0) target = $region21
    $region20: #{net_forward.1} parent=1 // pred_region
      _
    $region21: #{net_forward.1} parent=1 // pred_fallthru
      _
    // Predicated region
    $region22: #{net_forward.1} parent=1 // pred_check
      _
    $region23: #{net_forward.1} parent=1 // pred_check_branch
      %59 = sbr.rel (0) target = $region25
    $region24: #{net_forward.1} parent=1 // pred_region
      _
    $region25: #{net_forward.1} parent=1 // pred_fallthru
      _
    // Predicated region
    $region26: #{net_forward.1} parent=1 // pred_check
      _
    $region27: #{net_forward.1} parent=1 // pred_check_branch
      %61 = sbr.rel (0) target = $region29
    $region28: #{net_forward.1} parent=1 // pred_region
      _
    $region29: #{net_forward.1} parent=1 // pred_fallthru
      _
    // Predicated region
    $region30: #{net_forward.1} parent=1 // pred_check
      _
    $region31: #{net_forward.1} parent=1 // pred_check_branch
      %63 = sbr.rel (0) target = $region33
    $region32: #{net_forward.1} parent=1 // pred_region
      _
    $region33: #{net_forward.1} parent=1 // pred_fallthru
      _
    // Predicated region
    $region34: #{net_forward.1} parent=1 // pred_check
      _
    $region35: #{net_forward.1} parent=1 // pred_check_branch
      %65 = sbr.rel (0) target = $region37
    $region36: #{net_forward.1} parent=1 // pred_region
      %67 = vsyncadd [#allocation6], 0
      %s68 = sshll.u32 %s8, 4
      %s69 = int_to_ptr.hbm [resolvable:$true] %s68
      %s70 = sshll.u32 [#allocation7], 4
      %s71 = int_to_ptr.vmem [resolvable:$true] %s70
      %76 = dma.hbm_to_vmem [thread:$0]  %s69, 9216, %s71, [#allocation6], 192, 192, 12
    $region37: #{net_forward.1} parent=1 // pred_fallthru
      _
    // Predicated region
    $region38: #{net_forward.1} parent=1 // pred_check
      _
    $region39: #{net_forward.1} parent=1 // pred_check_branch
      %78 = sbr.rel (0) target = $region41
    $region40: #{net_forward.1} parent=1 // pred_region
      _
    $region41: #{net_forward.1} parent=1 // pred_fallthru
      _
    // Predicated region
    $region42: #{net_forward.1} parent=1 // pred_check
      _
    $region43: #{net_forward.1} parent=1 // pred_check_branch
      %80 = sbr.rel (0) target = $region45
    $region44: #{net_forward.1} parent=1 // pred_region
      _
    $region45: #{net_forward.1} parent=1 // pred_fallthru
      _
    // Predicated region
    $region46: #{net_forward.1} parent=1 // pred_check
      _
    $region47: #{net_forward.1} parent=1 // pred_check_branch
      %82 = sbr.rel (0) target = $region49
    $region48: #{net_forward.1} parent=1 // pred_region
      %84 = dma.done [#allocation3], 768
    $region49: #{net_forward.1} parent=1 // pred_fallthru
      _
    // Predicated region
    $region50: #{net_forward.1} parent=1 // pred_check
      _
    $region51: #{net_forward.1} parent=1 // pred_check_branch
      %86 = sbr.rel (0) target = $region53
    $region52: #{net_forward.1} parent=1 // pred_region
      %88 = dma.done [#allocation6], 1024
    $region53: #{net_forward.1} parent=1 // pred_fallthru
      _
    // Predicated region
    $region54: #{net_forward.1} parent=1 // pred_check
      _
    $region55: #{net_forward.1} parent=1 // pred_check_branch
      %90 = sbr.rel (0) target = $region57
    $region56: #{net_forward.1} parent=1 // pred_region
      %92 = dma.done [#allocation6], 9216
    $region57: #{net_forward.1} parent=1 // pred_fallthru
      _
    %v94 = vld [vmem:[%s0] sm:$0xff]
    %v95 = vld [vmem:[%s0 + $0x8] sm:$0xff]
    %v96 = vld [vmem:[%s0 + $0x10] sm:$0xff]
    %v97 = vld [vmem:[%s0 + $0x18] sm:$0xff]
    %v98 = vld [vmem:[%s0 + $0x20] sm:$0xff]
    %v99 = vld [vmem:[%s0 + $0x28] sm:$0xff]
    %v100 = vld [vmem:[%s0 + $0x30] sm:$0xff]
    %v101 = vld [vmem:[%s0 + $0x38] sm:$0xff]
    %vm110 = vcmask 1046528
    %v111 = vrot.slane %v94, 1
    %v112 = vrot.slane %v95, 1
    %v113 = vsel %vm110, %v111, %v112
    %v114 = vrot.slane %v96, 1
    %v115 = vrot.slane %v97, 1
    %v116 = vsel %vm110, %v114, %v115
    %v117 = vrot.slane %v98, 1
    %v118 = vrot.slane %v99, 1
    %v119 = vsel %vm110, %v117, %v118
    %v120 = vrot.slane %v100, 1
    %v121 = vrot.slane %v101, 1
    %v122 = vsel %vm110, %v120, %v121
    %123 = vrot.lane.b32.xlu0 %v113, 32
    %v124 = vpop.permute.xlu0 %123
    %125 = vrot.lane.b32.xlu0 %v112, 32
    %v126 = vpop.permute.xlu0 %125
    %127 = vrot.lane.b32.xlu0 %v116, 32
    %v128 = vpop.permute.xlu0 %127
    %129 = vrot.lane.b32.xlu0 %v115, 32
    %v130 = vpop.permute.xlu0 %129
    %131 = vrot.lane.b32.xlu0 %v119, 32
    %v132 = vpop.permute.xlu0 %131
    %133 = vrot.lane.b32.xlu0 %v118, 32
    %v134 = vpop.permute.xlu0 %133
    %135 = vrot.lane.b32.xlu0 %v122, 32
    %v136 = vpop.permute.xlu0 %135
    %137 = vrot.lane.b32.xlu0 %v121, 32
    %v138 = vpop.permute.xlu0 %137
    %vm147 = vcmask 1045504
    %v148 = vrot.slane %v94, 2
    %v149 = vrot.slane %v95, 2
    %v150 = vsel %vm147, %v148, %v149
    %v151 = vrot.slane %v96, 2
    %v152 = vrot.slane %v97, 2
    %v153 = vsel %vm147, %v151, %v152
    %v154 = vrot.slane %v98, 2
    %v155 = vrot.slane %v99, 2
    %v156 = vsel %vm147, %v154, %v155
    %v157 = vrot.slane %v100, 2
    %v158 = vrot.slane %v101, 2
    %v159 = vsel %vm147, %v157, %v158
    %160 = vrot.lane.b32.xlu0 %v150, 64
    %v161 = vpop.permute.xlu0 %160
    %162 = vrot.lane.b32.xlu0 %v149, 64
    %v163 = vpop.permute.xlu0 %162
    %164 = vrot.lane.b32.xlu0 %v153, 64
    %v165 = vpop.permute.xlu0 %164
    %166 = vrot.lane.b32.xlu0 %v152, 64
    %v167 = vpop.permute.xlu0 %166
    %168 = vrot.lane.b32.xlu0 %v156, 64
    %v169 = vpop.permute.xlu0 %168
    %170 = vrot.lane.b32.xlu0 %v155, 64
    %v171 = vpop.permute.xlu0 %170
    %172 = vrot.lane.b32.xlu0 %v159, 64
    %v173 = vpop.permute.xlu0 %172
    %174 = vrot.lane.b32.xlu0 %v158, 64
    %v175 = vpop.permute.xlu0 %174
    %vm184 = vcmask 261120
    %v185 = vsel %vm184, %v94, %v124
    %v186 = vsel %vm184, %v95, %v126
    %v187 = vsel %vm184, %v96, %v128
    %v188 = vsel %vm184, %v97, %v130
    %v189 = vsel %vm184, %v98, %v132
    %v190 = vsel %vm184, %v99, %v134
    %v191 = vsel %vm184, %v100, %v136
    %v192 = vsel %vm184, %v101, %v138
    %vm193 = vcmask 523264
    %v194 = vsel %vm193, %v185, %v161
    %v195 = vsel %vm193, %v186, %v163
    %v196 = vsel %vm193, %v187, %v165
    %v197 = vsel %vm193, %v188, %v167
    %v198 = vsel %vm193, %v189, %v169
    %v199 = vsel %vm193, %v190, %v171
    %v200 = vsel %vm193, %v191, %v173
    %v201 = vsel %vm193, %v192, %v175
    %v210 = vrot.slane %v194, 2
    %v211 = vrot.slane %v194, 4
    %v212 = vrot.slane %v194, 6
    %v213 = vrot.slane %v195, 2
    %v214 = vrot.slane %v195, 4
    %v215 = vrot.slane %v196, 2
    %v216 = vrot.slane %v196, 4
    %v217 = vrot.slane %v196, 6
    %v218 = vrot.slane %v197, 2
    %v219 = vrot.slane %v197, 4
    %v220 = vrot.slane %v198, 2
    %v221 = vrot.slane %v198, 4
    %v222 = vrot.slane %v198, 6
    %v223 = vrot.slane %v199, 2
    %v224 = vrot.slane %v199, 4
    %v225 = vrot.slane %v200, 2
    %v226 = vrot.slane %v200, 4
    %v227 = vrot.slane %v200, 6
    %v228 = vrot.slane %v201, 2
    %v229 = vrot.slane %v201, 4
    %230 = vst [vmem:[#allocation1] ss:$4 sm:$0xff] %v194
    %s231 = scalar_lea.vmem [#allocation1], 1
    %232 = vst [vmem:[%s231] ss:$4 sm:$0xff] %v210
    %s233 = scalar_lea.vmem [#allocation1], 2
    %234 = vst [vmem:[%s233] ss:$4 sm:$0xff] %v211
    %s235 = scalar_lea.vmem [#allocation1], 3
    %236 = vst [vmem:[%s235] ss:$4 sm:$0xff] %v212
    %s237 = scalar_lea.vmem [#allocation1], 32
    %238 = vst [vmem:[%s237] ss:$4 sm:$0xff] %v195
    %s239 = scalar_lea.vmem [#allocation1], 33
    %240 = vst [vmem:[%s239] ss:$4 sm:$0xff] %v213
    %s241 = scalar_lea.vmem [#allocation1], 34
    %242 = vst [vmem:[%s241] ss:$4 sm:$0xff] %v214
    %s243 = scalar_lea.vmem [#allocation1], 35
    %244 = vst [vmem:[%s243] ss:$4 sm:$0xff] %v196
    %v245 = vld.sshfl [vmem:[#allocation1] sm:$0xff pattern:$0x73625140]
    %v246 = vld.sshfl [vmem:[#allocation1 + $0x20] sm:$0xff pattern:$0x73625140]
    %247 = vst [vmem:[#allocation1] ss:$4 sm:$0xff] %v215
    %248 = vst [vmem:[%s231] ss:$4 sm:$0xff] %v216
    %249 = vst [vmem:[%s233] ss:$4 sm:$0xff] %v217
    %250 = vst [vmem:[%s235] ss:$4 sm:$0xff] %v197
    %251 = vst [vmem:[%s237] ss:$4 sm:$0xff] %v218
    %252 = vst [vmem:[%s239] ss:$4 sm:$0xff] %v219
    %253 = vst [vmem:[%s241] ss:$4 sm:$0xff] %v198
    %254 = vst [vmem:[%s243] ss:$4 sm:$0xff] %v220
    %v255 = vld.sshfl [vmem:[#allocation1] sm:$0xff pattern:$0x73625140]
    %v256 = vld.sshfl [vmem:[#allocation1 + $0x20] sm:$0xff pattern:$0x73625140]
    %257 = vst [vmem:[#allocation1] ss:$4 sm:$0xff] %v221
    %258 = vst [vmem:[%s231] ss:$4 sm:$0xff] %v222
    %259 = vst [vmem:[%s233] ss:$4 sm:$0xff] %v199
    %260 = vst [vmem:[%s235] ss:$4 sm:$0xff] %v223
    %261 = vst [vmem:[%s237] ss:$4 sm:$0xff] %v224
    %262 = vst [vmem:[%s239] ss:$4 sm:$0xff] %v200
    %263 = vst [vmem:[%s241] ss:$4 sm:$0xff] %v225
    %264 = vst [vmem:[%s243] ss:$4 sm:$0xff] %v226
    %v265 = vld.sshfl [vmem:[#allocation1] sm:$0xff pattern:$0x73625140]
    %v266 = vld.sshfl [vmem:[#allocation1 + $0x20] sm:$0xff pattern:$0x73625140]
    %267 = vst [vmem:[#allocation1] ss:$4 sm:$0xff] %v227
    %268 = vst [vmem:[%s231] ss:$4 sm:$0xff] %v201
    %269 = vst [vmem:[%s233] ss:$4 sm:$0xff] %v228
    %270 = vst [vmem:[%s235] ss:$4 sm:$0xff] %v229
    %v271 = vld.sshfl [vmem:[#allocation1] sm:$0xff pattern:$0x73625140]
    %v279 = vpack.c.bf16 %v246, %v245
    %v280 = vpack.c.bf16 %v256, %v255
    %v281 = vpack.c.bf16 %v266, %v265
    %v282 = vpack.c.bf16 %v271, %v271
    %v283 = vld [vmem:[#allocation2] sm:$0xf]
    %v284 = vld [vmem:[#allocation2 + $0x4] sm:$0xf]
    %v285 = vld [vmem:[#allocation2 + $0x8] sm:$0xf]
    %v286 = vld [vmem:[#allocation2 + $0xc] sm:$0xf]
    %v287 = vld [vmem:[#allocation2 + $0x10] sm:$0xf]
    %v288 = vld [vmem:[#allocation2 + $0x14] sm:$0xf]
    %v289 = vld [vmem:[#allocation2 + $0x18] sm:$0xf]
    %v290 = vld [vmem:[#allocation2 + $0x1c] sm:$0xf]
    %v291 = vld [vmem:[#allocation2 + $0x20] sm:$0xf]
    %v292 = vld [vmem:[#allocation2 + $0x24] sm:$0xf]
    %v293 = vld [vmem:[#allocation2 + $0x28] sm:$0xf]
    %v294 = vld [vmem:[#allocation2 + $0x2c] sm:$0xf]
    %v295 = vld [vmem:[%s2] sm:$0x1]
    %v297 = vperm.slane %v295, 0
    %v311 = vunpack.c.l.b16 %v283
    %v312 = vunpack.c.l.b16 %v284
    %v313 = vunpack.c.l.b16 %v285
    %v314 = vunpack.c.l.b16 %v286
    %v315 = vunpack.c.l.b16 %v287
    %v316 = vunpack.c.l.b16 %v288
    %v317 = vunpack.c.l.b16 %v289
    %v318 = vunpack.c.l.b16 %v290
    %v319 = vunpack.c.l.b16 %v291
    %v320 = vunpack.c.l.b16 %v292
    %v321 = vunpack.c.l.b16 %v293
    %v322 = vunpack.c.l.b16 %v294
    %v323 = vpack.c.b16 %v312, %v311
    %v324 = vpack.c.b16 %v314, %v313
    %v325 = vpack.c.b16 %v316, %v315
    %v326 = vpack.c.b16 %v318, %v317
    %v327 = vpack.c.b16 %v320, %v319
    %v328 = vpack.c.b16 %v322, %v321
    %vm335 = vcmask 785408
    %v337 = vsel %vm335, %v279, 0
    %v340 = vsel %vm335, %v280, 0
    %v343 = vsel %vm335, %v281, 0
    %v346 = vsel %vm335, %v282, 0
    %348 = vmatpush.bf16.msra.mxu0 0
    %349 = vmatpush.bf16.msra.mxu0 0
    %350 = vmatpush.bf16.msra.mxu0 %v328
    %351 = vmatpush.bf16.msra.mxu0 %v327
    %352 = vmatpush.bf16.msra.mxu0 %v326
    %353 = vmatpush.bf16.msra.mxu0 %v325
    %354 = vmatpush.bf16.msra.mxu0 %v324
    %355 = vmatpush.bf16.msra.mxu0 %v323
    %356 = vmatmul.bf16.gmra.mxu0 %v337
    %v357 = vpop.f32.mrf.mxu0
    %v358 = vadd.f32 %v297, %v357
    %v359 = vpop.f32.mrf.mxu0
    %v360 = vadd.f32 %v297, %v359
    %361 = vmatmul.bf16.gmra.mxu0 %v340
    %v362 = vpop.f32.mrf.mxu0
    %v363 = vadd.f32 %v297, %v362
    %v364 = vpop.f32.mrf.mxu0
    %v365 = vadd.f32 %v297, %v364
    %366 = vmatmul.bf16.gmra.mxu0 %v343
    %v367 = vpop.f32.mrf.mxu0
    %v368 = vadd.f32 %v297, %v367
    %v369 = vpop.f32.mrf.mxu0
    %v370 = vadd.f32 %v297, %v369
    %371 = vmatmul.bf16.gmra.mxu0 %v346
    %v372 = vpop.f32.mrf.mxu0
    %v373 = vadd.f32 %v297, %v372
    %v374 = vpop.f32.mrf.mxu0
    %375 = vdwg.mxu0
    %v376 = vmax.f32 %v358, 0.0
    %v377 = vmax.f32 %v360, 0.0
    %v378 = vmax.f32 %v363, 0.0
    %v379 = vmax.f32 %v365, 0.0
    %v380 = vmax.f32 %v368, 0.0
    %v381 = vmax.f32 %v370, 0.0
    %v382 = vmax.f32 %v373, 0.0
    %v390 = vrot.slane %v376, 2
    %v391 = vrot.slane %v376, 4
    %v392 = vrot.slane %v376, 6
    %v393 = vrot.slane %v377, 2
    %v394 = vrot.slane %v377, 4
    %v395 = vrot.slane %v377, 6
    %v396 = vrot.slane %v378, 2
    %v397 = vrot.slane %v378, 4
    %v398 = vrot.slane %v378, 6
    %v399 = vrot.slane %v379, 2
    %v400 = vrot.slane %v379, 4
    %v401 = vrot.slane %v379, 6
    %v402 = vrot.slane %v380, 2
    %v403 = vrot.slane %v380, 4
    %v404 = vrot.slane %v380, 6
    %v405 = vrot.slane %v381, 2
    %v406 = vrot.slane %v381, 4
    %v407 = vrot.slane %v381, 6
    %v408 = vrot.slane %v382, 2
    %v409 = vrot.slane %v382, 4
    %v410 = vrot.slane %v382, 6
    %411 = vst [vmem:[#allocation1] ss:$4 sm:$0xff] %v376
    %s412 = scalar_lea.vmem [#allocation1], 1
    %413 = vst [vmem:[%s412] ss:$4 sm:$0xff] %v390
    %s414 = scalar_lea.vmem [#allocation1], 2
    %415 = vst [vmem:[%s414] ss:$4 sm:$0xff] %v391
    %s416 = scalar_lea.vmem [#allocation1], 3
    %417 = vst [vmem:[%s416] ss:$4 sm:$0xff] %v392
    %s418 = scalar_lea.vmem [#allocation1], 32
    %419 = vst [vmem:[%s418] ss:$4 sm:$0xff] %v377
    %s420 = scalar_lea.vmem [#allocation1], 33
    %421 = vst [vmem:[%s420] ss:$4 sm:$0xff] %v393
    %s422 = scalar_lea.vmem [#allocation1], 34
    %423 = vst [vmem:[%s422] ss:$4 sm:$0xff] %v394
    %v424 = vld.sshfl [vmem:[#allocation1] sm:$0xff pattern:$0x73625140]
    %v425 = vld.sshfl [vmem:[#allocation1 + $0x20] sm:$0xff pattern:$0x73625140]
    %426 = vst [vmem:[#allocation1] ss:$4 sm:$0xff] %v395
    %427 = vst [vmem:[%s412] ss:$4 sm:$0xff] %v378
    %428 = vst [vmem:[%s414] ss:$4 sm:$0xff] %v396
    %429 = vst [vmem:[%s416] ss:$4 sm:$0xff] %v397
    %430 = vst [vmem:[%s418] ss:$4 sm:$0xff] %v398
    %431 = vst [vmem:[%s420] ss:$4 sm:$0xff] %v379
    %432 = vst [vmem:[%s422] ss:$4 sm:$0xff] %v399
    %v433 = vld.sshfl [vmem:[#allocation1] sm:$0xff pattern:$0x73625140]
    %v434 = vld.sshfl [vmem:[#allocation1 + $0x20] sm:$0xff pattern:$0x73625140]
    %435 = vst [vmem:[#allocation1] ss:$4 sm:$0xff] %v400
    %436 = vst [vmem:[%s412] ss:$4 sm:$0xff] %v401
    %437 = vst [vmem:[%s414] ss:$4 sm:$0xff] %v380
    %438 = vst [vmem:[%s416] ss:$4 sm:$0xff] %v402
    %439 = vst [vmem:[%s418] ss:$4 sm:$0xff] %v403
    %440 = vst [vmem:[%s420] ss:$4 sm:$0xff] %v404
    %441 = vst [vmem:[%s422] ss:$4 sm:$0xff] %v381
    %v442 = vld.sshfl [vmem:[#allocation1] sm:$0xff pattern:$0x73625140]
    %v443 = vld.sshfl [vmem:[#allocation1 + $0x20] sm:$0xff pattern:$0x73625140]
    %444 = vst [vmem:[#allocation1] ss:$4 sm:$0xff] %v405
    %445 = vst [vmem:[%s412] ss:$4 sm:$0xff] %v406
    %446 = vst [vmem:[%s414] ss:$4 sm:$0xff] %v407
    %447 = vst [vmem:[%s416] ss:$4 sm:$0xff] %v382
    %448 = vst [vmem:[%s418] ss:$4 sm:$0xff] %v408
    %449 = vst [vmem:[%s420] ss:$4 sm:$0xff] %v409
    %450 = vst [vmem:[%s422] ss:$4 sm:$0xff] %v410
    %v451 = vld.sshfl [vmem:[#allocation1] sm:$0xff pattern:$0x73625140]
    %v452 = vld.sshfl [vmem:[#allocation1 + $0x20] sm:$0xff pattern:$0x73625140]
    %v461 = vsel %vm147, %v425, -inf
    %v462 = vmax.f32 %v424, %v461
    %v463 = vrot.slane %v462, 4
    %v464 = vmax.f32 %v462, %v463
    %v465 = vrot.slane %v464, 2
    %v466 = vmax.f32 %v464, %v465
    %v467 = vrot.slane %v466, 1
    %v468 = vmax.f32 %v466, %v467
    %v469 = vsel %vm147, %v434, -inf
    %v470 = vmax.f32 %v433, %v469
    %v471 = vrot.slane %v470, 4
    %v472 = vmax.f32 %v470, %v471
    %v473 = vrot.slane %v472, 2
    %v474 = vmax.f32 %v472, %v473
    %v475 = vrot.slane %v474, 1
    %v476 = vmax.f32 %v474, %v475
    %v477 = vsel %vm147, %v443, -inf
    %v478 = vmax.f32 %v442, %v477
    %v479 = vrot.slane %v478, 4
    %v480 = vmax.f32 %v478, %v479
    %v481 = vrot.slane %v480, 2
    %v482 = vmax.f32 %v480, %v481
    %v483 = vrot.slane %v482, 1
    %v484 = vmax.f32 %v482, %v483
    %v485 = vsel %vm147, %v452, -inf
    %v486 = vmax.f32 %v451, %v485
    %v487 = vrot.slane %v486, 4
    %v488 = vmax.f32 %v486, %v487
    %v489 = vrot.slane %v488, 2
    %v490 = vmax.f32 %v488, %v489
    %v491 = vrot.slane %v490, 1
    %v492 = vmax.f32 %v490, %v491
    %vm493 = vcmask 1044480
    %v494 = vrot.slane %v94, 3
    %v495 = vrot.slane %v95, 3
    %v496 = vsel %vm493, %v494, %v495
    %v497 = vrot.slane %v96, 3
    %v498 = vrot.slane %v97, 3
    %v499 = vsel %vm493, %v497, %v498
    %v500 = vrot.slane %v98, 3
    %v501 = vrot.slane %v99, 3
    %v502 = vsel %vm493, %v500, %v501
    %v503 = vrot.slane %v100, 3
    %v504 = vrot.slane %v101, 3
    %v505 = vsel %vm493, %v503, %v504
    %506 = vrot.lane.b32.xlu0 %v496, 96
    %v507 = vpop.permute.xlu0 %506
    %508 = vrot.lane.b32.xlu0 %v495, 96
    %v509 = vpop.permute.xlu0 %508
    %510 = vrot.lane.b32.xlu0 %v499, 96
    %v511 = vpop.permute.xlu0 %510
    %512 = vrot.lane.b32.xlu0 %v498, 96
    %v513 = vpop.permute.xlu0 %512
    %514 = vrot.lane.b32.xlu0 %v502, 96
    %v515 = vpop.permute.xlu0 %514
    %516 = vrot.lane.b32.xlu0 %v501, 96
    %v517 = vpop.permute.xlu0 %516
    %518 = vrot.lane.b32.xlu0 %v505, 96
    %v519 = vpop.permute.xlu0 %518
    %520 = vrot.lane.b32.xlu0 %v504, 96
    %v521 = vpop.permute.xlu0 %520
    %v530 = vsel %vm335, %v194, %v507
    %v531 = vsel %vm335, %v195, %v509
    %v532 = vsel %vm335, %v196, %v511
    %v533 = vsel %vm335, %v197, %v513
    %v534 = vsel %vm335, %v198, %v515
    %v535 = vsel %vm335, %v199, %v517
    %v536 = vsel %vm335, %v200, %v519
    %v537 = vsel %vm335, %v201, %v521
    %v546 = vrot.slane %v530, 1
    %v547 = vrot.slane %v530, 2
    %v548 = vrot.slane %v530, 3
    %v549 = vrot.slane %v530, 4
    %v550 = vrot.slane %v530, 5
    %v551 = vrot.slane %v530, 6
    %v552 = vrot.slane %v530, 7
    %v553 = vrot.slane %v531, 1
    %v554 = vrot.slane %v531, 2
    %v555 = vrot.slane %v531, 3
    %v556 = vrot.slane %v531, 4
    %v557 = vrot.slane %v532, 1
    %v558 = vrot.slane %v532, 2
    %v559 = vrot.slane %v532, 3
    %v560 = vrot.slane %v532, 4
    %v561 = vrot.slane %v532, 5
    %v562 = vrot.slane %v532, 6
    %v563 = vrot.slane %v532, 7
    %v564 = vrot.slane %v533, 1
    %v565 = vrot.slane %v533, 2
    %v566 = vrot.slane %v533, 3
    %v567 = vrot.slane %v533, 4
    %v568 = vrot.slane %v534, 1
    %v569 = vrot.slane %v534, 2
    %v570 = vrot.slane %v534, 3
    %v571 = vrot.slane %v534, 4
    %v572 = vrot.slane %v534, 5
    %v573 = vrot.slane %v534, 6
    %v574 = vrot.slane %v534, 7
    %v575 = vrot.slane %v535, 1
    %v576 = vrot.slane %v535, 2
    %v577 = vrot.slane %v535, 3
    %v578 = vrot.slane %v535, 4
    %v579 = vrot.slane %v536, 1
    %v580 = vrot.slane %v536, 2
    %v581 = vrot.slane %v536, 3
    %v582 = vrot.slane %v536, 4
    %v583 = vrot.slane %v536, 5
    %v584 = vrot.slane %v536, 6
    %v585 = vrot.slane %v536, 7
    %v586 = vrot.slane %v537, 1
    %v587 = vrot.slane %v537, 2
    %v588 = vrot.slane %v537, 3
    %v589 = vrot.slane %v537, 4
    %590 = vst [vmem:[#allocation1] ss:$9 sm:$0xff] %v530
    %s591 = scalar_lea.vmem [#allocation1], 1
    %592 = vst [vmem:[%s591] ss:$9 sm:$0xff] %v546
    %s593 = scalar_lea.vmem [#allocation1], 2
    %594 = vst [vmem:[%s593] ss:$9 sm:$0xff] %v547
    %s595 = scalar_lea.vmem [#allocation1], 3
    %596 = vst [vmem:[%s595] ss:$9 sm:$0xff] %v548
    %s597 = scalar_lea.vmem [#allocation1], 4
    %598 = vst [vmem:[%s597] ss:$9 sm:$0xff] %v549
    %s599 = scalar_lea.vmem [#allocation1], 5
    %600 = vst [vmem:[%s599] ss:$9 sm:$0xff] %v550
    %s601 = scalar_lea.vmem [#allocation1], 6
    %602 = vst [vmem:[%s601] ss:$9 sm:$0xff] %v551
    %s603 = scalar_lea.vmem [#allocation1], 7
    %604 = vst [vmem:[%s603] ss:$9 sm:$0xff] %v552
    %v605 = vld [vmem:[#allocation1] sm:$0xff]
    %606 = vst [vmem:[#allocation1] ss:$9 sm:$0xff] %v531
    %607 = vst [vmem:[%s591] ss:$9 sm:$0xff] %v553
    %608 = vst [vmem:[%s593] ss:$9 sm:$0xff] %v554
    %609 = vst [vmem:[%s595] ss:$9 sm:$0xff] %v555
    %610 = vst [vmem:[%s597] ss:$9 sm:$0xff] %v556
    %611 = vst [vmem:[%s599] ss:$9 sm:$0xff] %v532
    %612 = vst [vmem:[%s601] ss:$9 sm:$0xff] %v557
    %613 = vst [vmem:[%s603] ss:$9 sm:$0xff] %v558
    %v614 = vld [vmem:[#allocation1] sm:$0xff]
    %615 = vst [vmem:[#allocation1] ss:$9 sm:$0xff] %v559
    %616 = vst [vmem:[%s591] ss:$9 sm:$0xff] %v560
    %617 = vst [vmem:[%s593] ss:$9 sm:$0xff] %v561
    %618 = vst [vmem:[%s595] ss:$9 sm:$0xff] %v562
    %619 = vst [vmem:[%s597] ss:$9 sm:$0xff] %v563
    %620 = vst [vmem:[%s599] ss:$9 sm:$0xff] %v533
    %621 = vst [vmem:[%s601] ss:$9 sm:$0xff] %v564
    %622 = vst [vmem:[%s603] ss:$9 sm:$0xff] %v565
    %v623 = vld [vmem:[#allocation1] sm:$0xff]
    %624 = vst [vmem:[#allocation1] ss:$9 sm:$0xff] %v566
    %625 = vst [vmem:[%s591] ss:$9 sm:$0xff] %v567
    %626 = vst [vmem:[%s593] ss:$9 sm:$0xff] %v534
    %627 = vst [vmem:[%s595] ss:$9 sm:$0xff] %v568
    %628 = vst [vmem:[%s597] ss:$9 sm:$0xff] %v569
    %629 = vst [vmem:[%s599] ss:$9 sm:$0xff] %v570
    %630 = vst [vmem:[%s601] ss:$9 sm:$0xff] %v571
    %631 = vst [vmem:[%s603] ss:$9 sm:$0xff] %v572
    %v632 = vld [vmem:[#allocation1] sm:$0xff]
    %633 = vst [vmem:[#allocation1] ss:$9 sm:$0xff] %v573
    %634 = vst [vmem:[%s591] ss:$9 sm:$0xff] %v574
    %635 = vst [vmem:[%s593] ss:$9 sm:$0xff] %v535
    %636 = vst [vmem:[%s595] ss:$9 sm:$0xff] %v575
    %637 = vst [vmem:[%s597] ss:$9 sm:$0xff] %v576
    %638 = vst [vmem:[%s599] ss:$9 sm:$0xff] %v577
    %639 = vst [vmem:[%s601] ss:$9 sm:$0xff] %v578
    %640 = vst [vmem:[%s603] ss:$9 sm:$0xff] %v536
    %v641 = vld [vmem:[#allocation1] sm:$0xff]
    %642 = vst [vmem:[#allocation1] ss:$9 sm:$0xff] %v579
    %643 = vst [vmem:[%s591] ss:$9 sm:$0xff] %v580
    %644 = vst [vmem:[%s593] ss:$9 sm:$0xff] %v581
    %645 = vst [vmem:[%s595] ss:$9 sm:$0xff] %v582
    %646 = vst [vmem:[%s597] ss:$9 sm:$0xff] %v583
    %647 = vst [vmem:[%s599] ss:$9 sm:$0xff] %v584
    %648 = vst [vmem:[%s601] ss:$9 sm:$0xff] %v585
    %649 = vst [vmem:[%s603] ss:$9 sm:$0xff] %v537
    %v650 = vld [vmem:[#allocation1] sm:$0xff]
    %651 = vst [vmem:[#allocation1] ss:$9 sm:$0xff] %v586
    %652 = vst [vmem:[%s591] ss:$9 sm:$0xff] %v587
    %653 = vst [vmem:[%s593] ss:$9 sm:$0xff] %v588
    %654 = vst [vmem:[%s595] ss:$9 sm:$0xff] %v589
    %v655 = vld [vmem:[#allocation1] sm:$0xff]
    %v663 = vpack.c.bf16 %v614, %v605
    %v664 = vpack.c.bf16 %v632, %v623
    %v665 = vpack.c.bf16 %v650, %v641
    %v666 = vpack.c.bf16 %v655, %v655
    %v667 = vld [vmem:[#allocation5] sm:$0xf]
    %v668 = vld [vmem:[#allocation5 + $0x4] sm:$0xf]
    %v669 = vld [vmem:[#allocation5 + $0x8] sm:$0xf]
    %v670 = vld [vmem:[#allocation5 + $0xc] sm:$0xf]
    %v671 = vld [vmem:[#allocation5 + $0x10] sm:$0xf]
    %v672 = vld [vmem:[#allocation5 + $0x14] sm:$0xf]
    %v673 = vld [vmem:[#allocation5 + $0x18] sm:$0xf]
    %v674 = vld [vmem:[#allocation5 + $0x1c] sm:$0xf]
    %v675 = vld [vmem:[#allocation5 + $0x20] sm:$0xf]
    %v676 = vld [vmem:[#allocation5 + $0x24] sm:$0xf]
    %v677 = vld [vmem:[#allocation5 + $0x28] sm:$0xf]
    %v678 = vld [vmem:[#allocation5 + $0x2c] sm:$0xf]
    %v679 = vld [vmem:[#allocation5 + $0x30] sm:$0xf]
    %v680 = vld [vmem:[#allocation5 + $0x34] sm:$0xf]
    %v681 = vld [vmem:[#allocation5 + $0x38] sm:$0xf]
    %v682 = vld [vmem:[#allocation5 + $0x3c] sm:$0xf]
    %v683 = vld [vmem:[%s4] sm:$0x1]
    %v685 = vperm.slane %v683, 0
    %v703 = vunpack.c.l.b16 %v667
    %v704 = vunpack.c.l.b16 %v668
    %v705 = vunpack.c.l.b16 %v669
    %v706 = vunpack.c.l.b16 %v670
    %v707 = vunpack.c.l.b16 %v671
    %v708 = vunpack.c.l.b16 %v672
    %v709 = vunpack.c.l.b16 %v673
    %v710 = vunpack.c.l.b16 %v674
    %v711 = vunpack.c.l.b16 %v675
    %v712 = vunpack.c.l.b16 %v676
    %v713 = vunpack.c.l.b16 %v677
    %v714 = vunpack.c.l.b16 %v678
    %v715 = vunpack.c.l.b16 %v679
    %v716 = vunpack.c.l.b16 %v680
    %v717 = vunpack.c.l.b16 %v681
    %v718 = vunpack.c.l.b16 %v682
    %v719 = vpack.c.b16 %v704, %v703
    %v720 = vpack.c.b16 %v706, %v705
    %v721 = vpack.c.b16 %v708, %v707
    %v722 = vpack.c.b16 %v710, %v709
    %v723 = vpack.c.b16 %v712, %v711
    %v724 = vpack.c.b16 %v714, %v713
    %v725 = vpack.c.b16 %v716, %v715
    %v726 = vpack.c.b16 %v718, %v717
    %735 = vmatpush.bf16.msra.mxu0 %v726
    %736 = vmatpush.bf16.msra.mxu0 %v725
    %737 = vmatpush.bf16.msra.mxu0 %v724
    %738 = vmatpush.bf16.msra.mxu0 %v723
    %739 = vmatpush.bf16.msra.mxu0 %v722
    %740 = vmatpush.bf16.msra.mxu0 %v721
    %741 = vmatpush.bf16.msra.mxu0 %v720
    %742 = vmatpush.bf16.msra.mxu0 %v719
    %743 = vmatmul.bf16.gmra.mxu0 %v663
    %v744 = vpop.f32.mrf.mxu0
    %v745 = vadd.f32 %v685, %v744
    %v746 = vpop.f32.mrf.mxu0
    %v747 = vadd.f32 %v685, %v746
    %748 = vmatmul.bf16.gmra.mxu0 %v664
    %v749 = vpop.f32.mrf.mxu0
    %v750 = vadd.f32 %v685, %v749
    %v751 = vpop.f32.mrf.mxu0
    %v752 = vadd.f32 %v685, %v751
    %753 = vmatmul.bf16.gmra.mxu0 %v665
    %v754 = vpop.f32.mrf.mxu0
    %v755 = vadd.f32 %v685, %v754
    %v756 = vpop.f32.mrf.mxu0
    %v757 = vadd.f32 %v685, %v756
    %758 = vmatmul.bf16.gmra.mxu0 %v666
    %v759 = vpop.f32.mrf.mxu0
    %v760 = vadd.f32 %v685, %v759
    %v761 = vpop.f32.mrf.mxu0
    %762 = vdwg.mxu0
    %v763 = vmax.f32 %v745, 0.0
    %v764 = vmax.f32 %v747, 0.0
    %v765 = vmax.f32 %v750, 0.0
    %v766 = vmax.f32 %v752, 0.0
    %v767 = vmax.f32 %v755, 0.0
    %v768 = vmax.f32 %v757, 0.0
    %v769 = vmax.f32 %v760, 0.0
    %v777 = vrot.slane %v763, 1
    %v778 = vrot.slane %v763, 2
    %v779 = vrot.slane %v763, 3
    %v780 = vrot.slane %v763, 4
    %v781 = vrot.slane %v763, 5
    %v782 = vrot.slane %v763, 6
    %v783 = vrot.slane %v763, 7
    %v784 = vrot.slane %v764, 1
    %v785 = vrot.slane %v764, 2
    %v786 = vrot.slane %v764, 3
    %v787 = vrot.slane %v764, 4
    %v788 = vrot.slane %v764, 5
    %v789 = vrot.slane %v764, 6
    %v790 = vrot.slane %v764, 7
    %v791 = vrot.slane %v765, 1
    %v792 = vrot.slane %v765, 2
    %v793 = vrot.slane %v765, 3
    %v794 = vrot.slane %v765, 4
    %v795 = vrot.slane %v765, 5
    %v796 = vrot.slane %v765, 6
    %v797 = vrot.slane %v765, 7
    %v798 = vrot.slane %v766, 1
    %v799 = vrot.slane %v766, 2
    %v800 = vrot.slane %v766, 3
    %v801 = vrot.slane %v766, 4
    %v802 = vrot.slane %v766, 5
    %v803 = vrot.slane %v766, 6
    %v804 = vrot.slane %v766, 7
    %v805 = vrot.slane %v767, 1
    %v806 = vrot.slane %v767, 2
    %v807 = vrot.slane %v767, 3
    %v808 = vrot.slane %v767, 4
    %v809 = vrot.slane %v767, 5
    %v810 = vrot.slane %v767, 6
    %v811 = vrot.slane %v767, 7
    %v812 = vrot.slane %v768, 1
    %v813 = vrot.slane %v768, 2
    %v814 = vrot.slane %v768, 3
    %v815 = vrot.slane %v768, 4
    %v816 = vrot.slane %v768, 5
    %v817 = vrot.slane %v768, 6
    %v818 = vrot.slane %v768, 7
    %v819 = vrot.slane %v769, 1
    %v820 = vrot.slane %v769, 2
    %v821 = vrot.slane %v769, 3
    %822 = vst [vmem:[#allocation1] ss:$9 sm:$0xff] %v763
    %s823 = scalar_lea.vmem [#allocation1], 1
    %824 = vst [vmem:[%s823] ss:$9 sm:$0xff] %v777
    %s825 = scalar_lea.vmem [#allocation1], 2
    %826 = vst [vmem:[%s825] ss:$9 sm:$0xff] %v778
    %s827 = scalar_lea.vmem [#allocation1], 3
    %828 = vst [vmem:[%s827] ss:$9 sm:$0xff] %v779
    %s829 = scalar_lea.vmem [#allocation1], 4
    %830 = vst [vmem:[%s829] ss:$9 sm:$0xff] %v780
    %s831 = scalar_lea.vmem [#allocation1], 5
    %832 = vst [vmem:[%s831] ss:$9 sm:$0xff] %v781
    %s833 = scalar_lea.vmem [#allocation1], 6
    %834 = vst [vmem:[%s833] ss:$9 sm:$0xff] %v782
    %s835 = scalar_lea.vmem [#allocation1], 7
    %836 = vst [vmem:[%s835] ss:$9 sm:$0xff] %v783
    %v837 = vld [vmem:[#allocation1] sm:$0xff]
    %838 = vst [vmem:[#allocation1] ss:$9 sm:$0xff] %v764
    %839 = vst [vmem:[%s823] ss:$9 sm:$0xff] %v784
    %840 = vst [vmem:[%s825] ss:$9 sm:$0xff] %v785
    %841 = vst [vmem:[%s827] ss:$9 sm:$0xff] %v786
    %842 = vst [vmem:[%s829] ss:$9 sm:$0xff] %v787
    %v843 = vld [vmem:[#allocation1] sm:$0xff]
    %844 = vst [vmem:[#allocation1] ss:$9 sm:$0xff] %v788
    %845 = vst [vmem:[%s823] ss:$9 sm:$0xff] %v789
    %846 = vst [vmem:[%s825] ss:$9 sm:$0xff] %v790
    %847 = vst [vmem:[%s827] ss:$9 sm:$0xff] %v765
    %848 = vst [vmem:[%s829] ss:$9 sm:$0xff] %v791
    %849 = vst [vmem:[%s831] ss:$9 sm:$0xff] %v792
    %850 = vst [vmem:[%s833] ss:$9 sm:$0xff] %v793
    %851 = vst [vmem:[%s835] ss:$9 sm:$0xff] %v794
    %v852 = vld [vmem:[#allocation1] sm:$0xff]
    %853 = vst [vmem:[#allocation1] ss:$9 sm:$0xff] %v795
    %854 = vst [vmem:[%s823] ss:$9 sm:$0xff] %v796
    %855 = vst [vmem:[%s825] ss:$9 sm:$0xff] %v797
    %856 = vst [vmem:[%s827] ss:$9 sm:$0xff] %v766
    %857 = vst [vmem:[%s829] ss:$9 sm:$0xff] %v798
    %v858 = vld [vmem:[#allocation1] sm:$0xff]
    %859 = vst [vmem:[#allocation1] ss:$9 sm:$0xff] %v799
    %860 = vst [vmem:[%s823] ss:$9 sm:$0xff] %v800
    %861 = vst [vmem:[%s825] ss:$9 sm:$0xff] %v801
    %862 = vst [vmem:[%s827] ss:$9 sm:$0xff] %v802
    %863 = vst [vmem:[%s829] ss:$9 sm:$0xff] %v803
    %864 = vst [vmem:[%s831] ss:$9 sm:$0xff] %v804
    %865 = vst [vmem:[%s833] ss:$9 sm:$0xff] %v767
    %866 = vst [vmem:[%s835] ss:$9 sm:$0xff] %v805
    %v867 = vld [vmem:[#allocation1] sm:$0xff]
    %868 = vst [vmem:[#allocation1] ss:$9 sm:$0xff] %v806
    %869 = vst [vmem:[%s823] ss:$9 sm:$0xff] %v807
    %870 = vst [vmem:[%s825] ss:$9 sm:$0xff] %v808
    %871 = vst [vmem:[%s827] ss:$9 sm:$0xff] %v809
    %872 = vst [vmem:[%s829] ss:$9 sm:$0xff] %v810
    %v873 = vld [vmem:[#allocation1] sm:$0xff]
    %874 = vst [vmem:[#allocation1] ss:$9 sm:$0xff] %v811
    %875 = vst [vmem:[%s823] ss:$9 sm:$0xff] %v768
    %876 = vst [vmem:[%s825] ss:$9 sm:$0xff] %v812
    %877 = vst [vmem:[%s827] ss:$9 sm:$0xff] %v813
    %878 = vst [vmem:[%s829] ss:$9 sm:$0xff] %v814
    %879 = vst [vmem:[%s831] ss:$9 sm:$0xff] %v815
    %880 = vst [vmem:[%s833] ss:$9 sm:$0xff] %v816
    %881 = vst [vmem:[%s835] ss:$9 sm:$0xff] %v817
    %v882 = vld [vmem:[#allocation1] sm:$0xff]
    %883 = vst [vmem:[#allocation1] ss:$9 sm:$0xff] %v818
    %884 = vst [vmem:[%s823] ss:$9 sm:$0xff] %v769
    %885 = vst [vmem:[%s825] ss:$9 sm:$0xff] %v819
    %886 = vst [vmem:[%s827] ss:$9 sm:$0xff] %v820
    %887 = vst [vmem:[%s829] ss:$9 sm:$0xff] %v821
    %v888 = vld [vmem:[#allocation1] sm:$0xff]
    %v897 = vsel %vm493, %v843, -inf
    %v898 = vmax.f32 %v837, %v897
    %v899 = vrot.slane %v898, 4
    %v900 = vmax.f32 %v898, %v899
    %v901 = vrot.slane %v900, 2
    %v902 = vmax.f32 %v900, %v901
    %v903 = vrot.slane %v902, 1
    %v904 = vmax.f32 %v902, %v903
    %v905 = vsel %vm493, %v858, -inf
    %v906 = vmax.f32 %v852, %v905
    %v907 = vrot.slane %v906, 4
    %v908 = vmax.f32 %v906, %v907
    %v909 = vrot.slane %v908, 2
    %v910 = vmax.f32 %v908, %v909
    %v911 = vrot.slane %v910, 1
    %v912 = vmax.f32 %v910, %v911
    %v913 = vsel %vm493, %v873, -inf
    %v914 = vmax.f32 %v867, %v913
    %v915 = vrot.slane %v914, 4
    %v916 = vmax.f32 %v914, %v915
    %v917 = vrot.slane %v916, 2
    %v918 = vmax.f32 %v916, %v917
    %v919 = vrot.slane %v918, 1
    %v920 = vmax.f32 %v918, %v919
    %v921 = vsel %vm493, %v888, -inf
    %v922 = vmax.f32 %v882, %v921
    %v923 = vrot.slane %v922, 4
    %v924 = vmax.f32 %v922, %v923
    %v925 = vrot.slane %v924, 2
    %v926 = vmax.f32 %v924, %v925
    %v927 = vrot.slane %v926, 1
    %v928 = vmax.f32 %v926, %v927
    %vm929 = vcmask 1043456
    %v930 = vrot.slane %v94, 4
    %v931 = vrot.slane %v95, 4
    %v932 = vsel %vm929, %v930, %v931
    %v933 = vrot.slane %v96, 4
    %v934 = vrot.slane %v97, 4
    %v935 = vsel %vm929, %v933, %v934
    %v936 = vrot.slane %v98, 4
    %v937 = vrot.slane %v99, 4
    %v938 = vsel %vm929, %v936, %v937
    %v939 = vrot.slane %v100, 4
    %v940 = vrot.slane %v101, 4
    %v941 = vsel %vm929, %v939, %v940
    %v942 = vrot.slane %v932, 4
    %v943 = vrot.slane %v931, 4
    %v944 = vrot.slane %v935, 4
    %v945 = vrot.slane %v934, 4
    %v946 = vrot.slane %v938, 4
    %v947 = vrot.slane %v937, 4
    %v948 = vrot.slane %v941, 4
    %v949 = vrot.slane %v940, 4
    %v950 = vsel %vm929, %v530, %v942
    %v951 = vsel %vm929, %v942, %v530
    %v952 = vrot.slane %v951, 4
    %v953 = vsel %vm929, %v531, %v943
    %v954 = vsel %vm929, %v532, %v944
    %v955 = vsel %vm929, %v944, %v532
    %v956 = vrot.slane %v955, 4
    %v957 = vsel %vm929, %v533, %v945
    %v958 = vsel %vm929, %v534, %v946
    %v959 = vsel %vm929, %v946, %v534
    %v960 = vrot.slane %v959, 4
    %v961 = vsel %vm929, %v535, %v947
    %v962 = vsel %vm929, %v536, %v948
    %v963 = vsel %vm929, %v948, %v536
    %v964 = vrot.slane %v963, 4
    %v965 = vsel %vm929, %v537, %v949
    %966 = vst [vmem:[#allocation1] ss:$2 sm:$0xff] %v950
    %s967 = scalar_lea.vmem [#allocation1], 1
    %968 = vst [vmem:[%s967] ss:$2 sm:$0xff] %v952
    %s969 = scalar_lea.vmem [#allocation1], 16
    %970 = vst [vmem:[%s969] ss:$2 sm:$0xff] %v953
    %s971 = scalar_lea.vmem [#allocation1], 17
    %972 = vst [vmem:[%s971] ss:$2 sm:$0xff] %v954
    %s973 = scalar_lea.vmem [#allocation1], 32
    %974 = vst [vmem:[%s973] ss:$2 sm:$0xff] %v956
    %s975 = scalar_lea.vmem [#allocation1], 33
    %976 = vst [vmem:[%s975] ss:$2 sm:$0xff] %v957
    %s977 = scalar_lea.vmem [#allocation1], 48
    %978 = vst [vmem:[%s977] ss:$2 sm:$0xff] %v958
    %s979 = scalar_lea.vmem [#allocation1], 49
    %980 = vst [vmem:[%s979] ss:$2 sm:$0xff] %v960
    %v981 = vld.sshfl [vmem:[#allocation1] sm:$0xff pattern:$0x75316420]
    %v982 = vld.sshfl [vmem:[#allocation1 + $0x8] sm:$0xff pattern:$0x75316420]
    %v983 = vld.sshfl [vmem:[#allocation1 + $0x10] sm:$0xff pattern:$0x75316420]
    %v984 = vld.sshfl [vmem:[#allocation1 + $0x18] sm:$0xff pattern:$0x75316420]
    %v985 = vld.sshfl [vmem:[#allocation1 + $0x20] sm:$0xff pattern:$0x75316420]
    %v986 = vld.sshfl [vmem:[#allocation1 + $0x28] sm:$0xff pattern:$0x75316420]
    %v987 = vld.sshfl [vmem:[#allocation1 + $0x30] sm:$0xff pattern:$0x75316420]
    %v988 = vld.sshfl [vmem:[#allocation1 + $0x38] sm:$0xff pattern:$0x75316420]
    %989 = vst [vmem:[#allocation1] ss:$2 sm:$0xff] %v961
    %990 = vst [vmem:[%s967] ss:$2 sm:$0xff] %v962
    %991 = vst [vmem:[%s969] ss:$2 sm:$0xff] %v964
    %992 = vst [vmem:[%s971] ss:$2 sm:$0xff] %v965
    %v993 = vld.sshfl [vmem:[#allocation1] sm:$0xff pattern:$0x75316420]
    %v994 = vld.sshfl [vmem:[#allocation1 + $0x8] sm:$0xff pattern:$0x75316420]
    %v995 = vld.sshfl [vmem:[#allocation1 + $0x10] sm:$0xff pattern:$0x75316420]
    %v996 = vld.sshfl [vmem:[#allocation1 + $0x18] sm:$0xff pattern:$0x75316420]
    %v1009 = vpack.c.bf16 %v983, %v981
    %v1010 = vpack.c.bf16 %v984, %v982
    %v1011 = vpack.c.bf16 %v987, %v985
    %v1012 = vpack.c.bf16 %v988, %v986
    %v1013 = vpack.c.bf16 %v995, %v993
    %v1014 = vpack.c.bf16 %v996, %v994
    %v1015 = vld [vmem:[%s5] sm:$0xf]
    %v1016 = vld [vmem:[%s5 + $0x4] sm:$0xf]
    %v1017 = vld [vmem:[%s5 + $0x8] sm:$0xf]
    %v1018 = vld [vmem:[%s5 + $0xc] sm:$0xf]
    %v1019 = vld [vmem:[%s5 + $0x10] sm:$0xf]
    %v1020 = vld [vmem:[%s5 + $0x14] sm:$0xf]
    %v1021 = vld [vmem:[%s5 + $0x18] sm:$0xf]
    %v1022 = vld [vmem:[%s5 + $0x1c] sm:$0xf]
    %v1023 = vld [vmem:[%s5 + $0x20] sm:$0xf]
    %v1024 = vld [vmem:[%s5 + $0x24] sm:$0xf]
    %v1025 = vld [vmem:[%s5 + $0x28] sm:$0xf]
    %v1026 = vld [vmem:[%s5 + $0x2c] sm:$0xf]
    %v1027 = vld [vmem:[%s5 + $0x30] sm:$0xf]
    %v1028 = vld [vmem:[%s5 + $0x34] sm:$0xf]
    %v1029 = vld [vmem:[%s5 + $0x38] sm:$0xf]
    %v1030 = vld [vmem:[%s5 + $0x3c] sm:$0xf]
    %v1031 = vld [vmem:[%s5 + $0x40] sm:$0xf]
    %v1032 = vld [vmem:[%s5 + $0x44] sm:$0xf]
    %v1033 = vld [vmem:[%s5 + $0x48] sm:$0xf]
    %v1034 = vld [vmem:[%s5 + $0x4c] sm:$0xf]
    %v1035 = vld [vmem:[%s6] sm:$0x1]
    %v1037 = vperm.slane %v1035, 0
    %v1059 = vunpack.c.l.b16 %v1015
    %v1060 = vunpack.c.l.b16 %v1016
    %v1061 = vunpack.c.l.b16 %v1017
    %v1062 = vunpack.c.l.b16 %v1018
    %v1063 = vunpack.c.l.b16 %v1019
    %v1064 = vunpack.c.l.b16 %v1020
    %v1065 = vunpack.c.l.b16 %v1021
    %v1066 = vunpack.c.l.b16 %v1022
    %v1067 = vunpack.c.l.b16 %v1023
    %v1068 = vunpack.c.l.b16 %v1024
    %v1069 = vunpack.c.l.b16 %v1025
    %v1070 = vunpack.c.l.b16 %v1026
    %v1071 = vunpack.c.l.b16 %v1027
    %v1072 = vunpack.c.l.b16 %v1028
    %v1073 = vunpack.c.l.b16 %v1029
    %v1074 = vunpack.c.l.b16 %v1030
    %v1075 = vunpack.c.l.b16 %v1031
    %v1076 = vunpack.c.l.b16 %v1032
    %v1077 = vunpack.c.l.b16 %v1033
    %v1078 = vunpack.c.l.b16 %v1034
    %v1079 = vpack.c.b16 %v1060, %v1059
    %v1080 = vpack.c.b16 %v1062, %v1061
    %v1081 = vpack.c.b16 %v1064, %v1063
    %v1082 = vpack.c.b16 %v1066, %v1065
    %v1083 = vpack.c.b16 %v1068, %v1067
    %v1084 = vpack.c.b16 %v1070, %v1069
    %v1085 = vpack.c.b16 %v1072, %v1071
    %v1086 = vpack.c.b16 %v1074, %v1073
    %v1087 = vpack.c.b16 %v1076, %v1075
    %v1088 = vpack.c.b16 %v1078, %v1077
    %v1100 = vsel %vm184, %v1010, 0
    %v1103 = vsel %vm184, %v1012, 0
    %v1106 = vsel %vm184, %v1014, 0
    %1108 = vmatpush.bf16.msra.mxu0 %v1086
    %1109 = vmatpush.bf16.msra.mxu0 %v1085
    %1110 = vmatpush.bf16.msra.mxu0 %v1084
    %1111 = vmatpush.bf16.msra.mxu0 %v1083
    %1112 = vmatpush.bf16.msra.mxu0 %v1082
    %1113 = vmatpush.bf16.msra.mxu0 %v1081
    %1114 = vmatpush.bf16.msra.mxu0 %v1080
    %1115 = vmatpush.bf16.msra.mxu0 %v1079
    %1116 = vmatmul.bf16.gmra.mxu0 %v1009
    %v1117 = vpop.f32.mrf.mxu0
    %v1118 = vadd.f32 %v1037, %v1117
    %v1119 = vpop.f32.mrf.mxu0
    %v1120 = vadd.f32 %v1037, %v1119
    %1121 = vmatmul.bf16.gmra.mxu0 %v1011
    %v1122 = vpop.f32.mrf.mxu0
    %v1123 = vadd.f32 %v1037, %v1122
    %v1124 = vpop.f32.mrf.mxu0
    %v1125 = vadd.f32 %v1037, %v1124
    %1126 = vmatmul.bf16.gmra.mxu0 %v1013
    %v1127 = vpop.f32.mrf.mxu0
    %v1128 = vadd.f32 %v1037, %v1127
    %v1129 = vpop.f32.mrf.mxu0
    %v1130 = vadd.f32 %v1037, %v1129
    %1131 = vdwg.mxu0
    %1132 = vmatpush.bf16.msra.mxu0 0
    %1133 = vmatpush.bf16.msra.mxu0 0
    %1134 = vmatpush.bf16.msra.mxu0 0
    %1135 = vmatpush.bf16.msra.mxu0 0
    %1136 = vmatpush.bf16.msra.mxu0 0
    %1137 = vmatpush.bf16.msra.mxu0 0
    %1138 = vmatpush.bf16.msra.mxu0 %v1088
    %1139 = vmatpush.bf16.msra.mxu0 %v1087
    %1140 = vmatmul.bf16.gmra.mxu0 %v1100
    %v1141 = vpop.f32.mrf.mxu0
    %v1142 = vadd.f32 %v1118, %v1141
    %v1143 = vpop.f32.mrf.mxu0
    %v1144 = vadd.f32 %v1120, %v1143
    %1145 = vmatmul.bf16.gmra.mxu0 %v1103
    %v1146 = vpop.f32.mrf.mxu0
    %v1147 = vadd.f32 %v1123, %v1146
    %v1148 = vpop.f32.mrf.mxu0
    %v1149 = vadd.f32 %v1125, %v1148
    %1150 = vmatmul.bf16.gmra.mxu0 %v1106
    %v1151 = vpop.f32.mrf.mxu0
    %v1152 = vadd.f32 %v1128, %v1151
    %v1153 = vpop.f32.mrf.mxu0
    %v1154 = vadd.f32 %v1130, %v1153
    %1155 = vdwg.mxu0
    %v1156 = vmax.f32 %v1142, 0.0
    %v1157 = vmax.f32 %v1144, 0.0
    %v1158 = vmax.f32 %v1147, 0.0
    %v1159 = vmax.f32 %v1149, 0.0
    %v1160 = vmax.f32 %v1152, 0.0
    %v1161 = vmax.f32 %v1154, 0.0
    %v1168 = vrot.slane %v1156, 4
    %v1169 = vrot.slane %v1157, 4
    %v1170 = vrot.slane %v1158, 4
    %v1171 = vrot.slane %v1159, 4
    %v1172 = vrot.slane %v1160, 4
    %v1173 = vrot.slane %v1161, 4
    %1174 = vst [vmem:[#allocation1] ss:$2 sm:$0xff] %v1156
    %s1175 = scalar_lea.vmem [#allocation1], 1
    %1176 = vst [vmem:[%s1175] ss:$2 sm:$0xff] %v1168
    %s1177 = scalar_lea.vmem [#allocation1], 16
    %1178 = vst [vmem:[%s1177] ss:$2 sm:$0xff] %v1157
    %v1179 = vld.sshfl [vmem:[#allocation1] sm:$0xff pattern:$0x75316420]
    %v1180 = vld.sshfl [vmem:[#allocation1 + $0x10] sm:$0xff pattern:$0x75316420]
    %s1181 = scalar_lea.vmem [#allocation1], 32
    %1182 = vst [vmem:[%s1181] ss:$2 sm:$0xff] %v1169
    %s1183 = scalar_lea.vmem [#allocation1], 33
    %1184 = vst [vmem:[%s1183] ss:$2 sm:$0xff] %v1158
    %s1185 = scalar_lea.vmem [#allocation1], 48
    %1186 = vst [vmem:[%s1185] ss:$2 sm:$0xff] %v1170
    %v1187 = vld.sshfl [vmem:[#allocation1 + $0x20] sm:$0xff pattern:$0x75316420]
    %v1188 = vld.sshfl [vmem:[#allocation1 + $0x30] sm:$0xff pattern:$0x75316420]
    %1189 = vst [vmem:[#allocation1] ss:$2 sm:$0xff] %v1159
    %1190 = vst [vmem:[%s1175] ss:$2 sm:$0xff] %v1171
    %1191 = vst [vmem:[%s1177] ss:$2 sm:$0xff] %v1160
    %v1192 = vld.sshfl [vmem:[#allocation1] sm:$0xff pattern:$0x75316420]
    %v1193 = vld.sshfl [vmem:[#allocation1 + $0x10] sm:$0xff pattern:$0x75316420]
    %1194 = vst [vmem:[%s1181] ss:$2 sm:$0xff] %v1172
    %1195 = vst [vmem:[%s1183] ss:$2 sm:$0xff] %v1161
    %1196 = vst [vmem:[%s1185] ss:$2 sm:$0xff] %v1173
    %v1197 = vld.sshfl [vmem:[#allocation1 + $0x20] sm:$0xff pattern:$0x75316420]
    %v1198 = vld.sshfl [vmem:[#allocation1 + $0x30] sm:$0xff pattern:$0x75316420]
    %v1207 = vsel %vm929, %v1180, -inf
    %v1208 = vmax.f32 %v1179, %v1207
    %v1209 = vrot.slane %v1208, 4
    %v1210 = vmax.f32 %v1208, %v1209
    %v1211 = vrot.slane %v1210, 2
    %v1212 = vmax.f32 %v1210, %v1211
    %v1213 = vrot.slane %v1212, 1
    %v1214 = vmax.f32 %v1212, %v1213
    %v1215 = vsel %vm929, %v1188, -inf
    %v1216 = vmax.f32 %v1187, %v1215
    %v1217 = vrot.slane %v1216, 4
    %v1218 = vmax.f32 %v1216, %v1217
    %v1219 = vrot.slane %v1218, 2
    %v1220 = vmax.f32 %v1218, %v1219
    %v1221 = vrot.slane %v1220, 1
    %v1222 = vmax.f32 %v1220, %v1221
    %v1223 = vsel %vm929, %v1193, -inf
    %v1224 = vmax.f32 %v1192, %v1223
    %v1225 = vrot.slane %v1224, 4
    %v1226 = vmax.f32 %v1224, %v1225
    %v1227 = vrot.slane %v1226, 2
    %v1228 = vmax.f32 %v1226, %v1227
    %v1229 = vrot.slane %v1228, 1
    %v1230 = vmax.f32 %v1228, %v1229
    %v1231 = vsel %vm929, %v1198, -inf
    %v1232 = vmax.f32 %v1197, %v1231
    %v1233 = vrot.slane %v1232, 4
    %v1234 = vmax.f32 %v1232, %v1233
    %v1235 = vrot.slane %v1234, 2
    %v1236 = vmax.f32 %v1234, %v1235
    %v1237 = vrot.slane %v1236, 1
    %v1238 = vmax.f32 %v1236, %v1237
    %vm1243 = vcmask 1041409
    %v1244 = vsel %vm1243, %v476, %v468
    %vm1245 = vcmask 1042434
    %v1246 = vsel %vm1245, %v484, %v1244
    %vm1247 = vcmask 1043459
    %v1248 = vsel %vm1247, %v492, %v1246
    %v1254 = vsel %vm1243, %v912, %v904
    %v1255 = vsel %vm1245, %v920, %v1254
    %v1256 = vsel %vm1247, %v928, %v1255
    %v1262 = vsel %vm1243, %v1222, %v1214
    %v1263 = vsel %vm1245, %v1230, %v1262
    %v1264 = vsel %vm1247, %v1238, %v1263
    %v1266 = vsel %vm929, %v1248, 0.0
    %v1267 = vrot.slane %v1266, 4
    %v1268 = vadd.f32 %v1266, %v1267
    %v1269 = vrot.slane %v1268, 2
    %v1270 = vadd.f32 %v1268, %v1269
    %v1271 = vrot.slane %v1270, 1
    %v1272 = vadd.f32 %v1270, %v1271
    %v1273 = vsel %vm929, %v1256, 0.0
    %v1274 = vrot.slane %v1273, 4
    %v1275 = vadd.f32 %v1273, %v1274
    %v1276 = vrot.slane %v1275, 2
    %v1277 = vadd.f32 %v1275, %v1276
    %v1278 = vrot.slane %v1277, 1
    %v1279 = vadd.f32 %v1277, %v1278
    %v1280 = vsel %vm929, %v1264, 0.0
    %v1281 = vrot.slane %v1280, 4
    %v1282 = vadd.f32 %v1280, %v1281
    %v1283 = vrot.slane %v1282, 2
    %v1284 = vadd.f32 %v1282, %v1283
    %v1285 = vrot.slane %v1284, 1
    %v1286 = vadd.f32 %v1284, %v1285
    %v1287 = vrcp.pop 4.0
    %v1288 = vmul.f32 4.0, %v1287
    %v1289 = vsub.f32 1.0, %v1288
    %v1290 = vmul.f32 %v1287, %v1289
    %v1291 = vadd.f32 %v1287, %v1290
    %vm1292 = vweird.f32 %v1287
    %v1293 = vsel %vm1292, %v1287, %v1291
    %v1294 = vmul.f32 %v1272, %v1293
    %v1295 = vmul.f32 %v1279, %v1293
    %v1296 = vmul.f32 %v1286, %v1293
    %v1300 = vrot.slane %v1295, 7
    %v1301 = vrot.slane %v1296, 6
    %vm1302 = vcmask 1040384
    %v1303 = vsel %vm1302, %v1294, %v1300
    %vm1304 = vcmask 1041408
    %v1305 = vsel %vm1304, %v1303, %v1301
    %v1307 = vlaneseq
    %vm1308 = vcmp.ge.s32.totalorder %v1307, 0
    %vm1309 = vcmp.lt.s32.totalorder %v1307, 384
    %vm1310 = vmand %vm1308, %vm1309
    %1311 = vst.msk [vmem:[%s11] sm:$0x7] %vm1310, %v1305
    %v1312 = vpack.c.bf16 %v1248, %v1248
    %v1313 = vpack.c.bf16 %v1256, %v1256
    %v1314 = vpack.c.bf16 %v1264, %v1264
    %v1315 = vld [vmem:[%s7] sm:$0xff]
    %v1316 = vld [vmem:[%s7 + $0x8] sm:$0xf]
    %v1317 = vld [vmem:[%s7 + $0xc] sm:$0xff]
    %v1318 = vld [vmem:[%s7 + $0x14] sm:$0xf]
    %v1319 = vld [vmem:[%s7 + $0x18] sm:$0xff]
    %v1320 = vld [vmem:[%s7 + $0x20] sm:$0xf]
    %v1321 = vld [vmem:[%s7 + $0x24] sm:$0xff]
    %v1322 = vld [vmem:[%s7 + $0x2c] sm:$0xf]
    %v1323 = vld [vmem:[%s7 + $0x30] sm:$0xff]
    %v1324 = vld [vmem:[%s7 + $0x38] sm:$0xf]
    %v1325 = vld [vmem:[%s7 + $0x3c] sm:$0xff]
    %v1326 = vld [vmem:[%s7 + $0x44] sm:$0xf]
    %v1327 = vld [vmem:[%s7 + $0x48] sm:$0xff]
    %v1328 = vld [vmem:[%s7 + $0x50] sm:$0xf]
    %v1329 = vld [vmem:[%s7 + $0x54] sm:$0xff]
    %v1330 = vld [vmem:[%s7 + $0x5c] sm:$0xf]
    %v1331 = vld [vmem:[%s7 + $0x60] sm:$0xff]
    %v1332 = vld [vmem:[%s7 + $0x68] sm:$0xf]
    %v1333 = vld [vmem:[%s7 + $0x6c] sm:$0xff]
    %v1334 = vld [vmem:[%s7 + $0x74] sm:$0xf]
    %v1335 = vld [vmem:[%s7 + $0x78] sm:$0xff]
    %v1336 = vld [vmem:[%s7 + $0x80] sm:$0xf]
    %v1337 = vld [vmem:[%s7 + $0x84] sm:$0xff]
    %v1338 = vld [vmem:[%s7 + $0x8c] sm:$0xf]
    %v1339 = vld [vmem:[%s7 + $0x90] sm:$0xff]
    %v1340 = vld [vmem:[%s7 + $0x98] sm:$0xf]
    %v1341 = vld [vmem:[%s7 + $0x9c] sm:$0xff]
    %v1342 = vld [vmem:[%s7 + $0xa4] sm:$0xf]
    %v1343 = vld [vmem:[%s7 + $0xa8] sm:$0xff]
    %v1344 = vld [vmem:[%s7 + $0xb0] sm:$0xf]
    %v1345 = vld [vmem:[%s7 + $0xb4] sm:$0xff]
    %v1346 = vld [vmem:[%s7 + $0xbc] sm:$0xf]
    %v1347 = vld [vmem:[%s7 + $0xc0] sm:$0xff]
    %v1348 = vld [vmem:[%s7 + $0xc8] sm:$0xf]
    %v1349 = vld [vmem:[%s7 + $0xcc] sm:$0xff]
    %v1350 = vld [vmem:[%s7 + $0xd4] sm:$0xf]
    %v1351 = vld [vmem:[%s7 + $0xd8] sm:$0xff]
    %v1352 = vld [vmem:[%s7 + $0xe0] sm:$0xf]
    %v1353 = vld [vmem:[%s7 + $0xe4] sm:$0xff]
    %v1354 = vld [vmem:[%s7 + $0xec] sm:$0xf]
    %v1355 = vld [vmem:[%s7 + $0xf0] sm:$0xff]
    %v1356 = vld [vmem:[%s7 + $0xf8] sm:$0xf]
    %v1357 = vld [vmem:[%s7 + $0xfc] sm:$0xff]
    %v1358 = vld [vmem:[%s7 + $0x104] sm:$0xf]
    %v1359 = vld [vmem:[%s7 + $0x108] sm:$0xff]
    %v1360 = vld [vmem:[%s7 + $0x110] sm:$0xf]
    %v1361 = vld [vmem:[%s7 + $0x114] sm:$0xff]
    %v1362 = vld [vmem:[%s7 + $0x11c] sm:$0xf]
    %v1363 = vld [vmem:[%s7 + $0x120] sm:$0xff]
    %v1364 = vld [vmem:[%s7 + $0x128] sm:$0xf]
    %v1365 = vld [vmem:[%s7 + $0x12c] sm:$0xff]
    %v1366 = vld [vmem:[%s7 + $0x134] sm:$0xf]
    %v1367 = vld [vmem:[%s7 + $0x138] sm:$0xff]
    %v1368 = vld [vmem:[%s7 + $0x140] sm:$0xf]
    %v1369 = vld [vmem:[%s7 + $0x144] sm:$0xff]
    %v1370 = vld [vmem:[%s7 + $0x14c] sm:$0xf]
    %v1371 = vld [vmem:[%s7 + $0x150] sm:$0xff]
    %v1372 = vld [vmem:[%s7 + $0x158] sm:$0xf]
    %v1373 = vld [vmem:[%s7 + $0x15c] sm:$0xff]
    %v1374 = vld [vmem:[%s7 + $0x164] sm:$0xf]
    %v1375 = vld [vmem:[%s7 + $0x168] sm:$0xff]
    %v1376 = vld [vmem:[%s7 + $0x170] sm:$0xf]
    %v1377 = vld [vmem:[%s7 + $0x174] sm:$0xff]
    %v1378 = vld [vmem:[%s7 + $0x17c] sm:$0xf]
    %v1379 = vld [vmem:[%s7 + $0x180] sm:$0xff]
    %v1380 = vld [vmem:[%s7 + $0x188] sm:$0xf]
    %v1381 = vld [vmem:[%s7 + $0x18c] sm:$0xff]
    %v1382 = vld [vmem:[%s7 + $0x194] sm:$0xf]
    %v1383 = vld [vmem:[%s7 + $0x198] sm:$0xff]
    %v1384 = vld [vmem:[%s7 + $0x1a0] sm:$0xf]
    %v1385 = vld [vmem:[%s7 + $0x1a4] sm:$0xff]
    %v1386 = vld [vmem:[%s7 + $0x1ac] sm:$0xf]
    %v1387 = vld [vmem:[%s7 + $0x1b0] sm:$0xff]
    %v1388 = vld [vmem:[%s7 + $0x1b8] sm:$0xf]
    %v1389 = vld [vmem:[%s7 + $0x1bc] sm:$0xff]
    %v1390 = vld [vmem:[%s7 + $0x1c4] sm:$0xf]
    %v1391 = vld [vmem:[%s7 + $0x1c8] sm:$0xff]
    %v1392 = vld [vmem:[%s7 + $0x1d0] sm:$0xf]
    %v1393 = vld [vmem:[%s7 + $0x1d4] sm:$0xff]
    %v1394 = vld [vmem:[%s7 + $0x1dc] sm:$0xf]
    %v1395 = vld [vmem:[%s7 + $0x1e0] sm:$0xff]
    %v1396 = vld [vmem:[%s7 + $0x1e8] sm:$0xf]
    %v1397 = vld [vmem:[%s7 + $0x1ec] sm:$0xff]
    %v1398 = vld [vmem:[%s7 + $0x1f4] sm:$0xf]
    %v1399 = vld [vmem:[%s7 + $0x1f8] sm:$0xff]
    %v1400 = vld [vmem:[%s7 + $0x200] sm:$0xf]
    %v1401 = vld [vmem:[%s7 + $0x204] sm:$0xff]
    %v1402 = vld [vmem:[%s7 + $0x20c] sm:$0xf]
    %v1403 = vld [vmem:[%s7 + $0x210] sm:$0xff]
    %v1404 = vld [vmem:[%s7 + $0x218] sm:$0xf]
    %v1405 = vld [vmem:[%s7 + $0x21c] sm:$0xff]
    %v1406 = vld [vmem:[%s7 + $0x224] sm:$0xf]
    %v1407 = vld [vmem:[%s7 + $0x228] sm:$0xff]
    %v1408 = vld [vmem:[%s7 + $0x230] sm:$0xf]
    %v1409 = vld [vmem:[%s7 + $0x234] sm:$0xff]
    %v1410 = vld [vmem:[%s7 + $0x23c] sm:$0xf]
    %v1507 = vunpack.c.l.b16 %v1315
    %v1508 = vunpack.c.h.b16 %v1315
    %v1509 = vunpack.c.l.b16 %v1316
    %v1510 = vunpack.c.l.b16 %v1317
    %v1511 = vunpack.c.h.b16 %v1317
    %v1512 = vunpack.c.l.b16 %v1318
    %v1513 = vunpack.c.l.b16 %v1319
    %v1514 = vunpack.c.h.b16 %v1319
    %v1515 = vunpack.c.l.b16 %v1320
    %v1516 = vunpack.c.l.b16 %v1321
    %v1517 = vunpack.c.h.b16 %v1321
    %v1518 = vunpack.c.l.b16 %v1322
    %v1519 = vunpack.c.l.b16 %v1323
    %v1520 = vunpack.c.h.b16 %v1323
    %v1521 = vunpack.c.l.b16 %v1324
    %v1522 = vunpack.c.l.b16 %v1325
    %v1523 = vunpack.c.h.b16 %v1325
    %v1524 = vunpack.c.l.b16 %v1326
    %v1525 = vunpack.c.l.b16 %v1327
    %v1526 = vunpack.c.h.b16 %v1327
    %v1527 = vunpack.c.l.b16 %v1328
    %v1528 = vunpack.c.l.b16 %v1329
    %v1529 = vunpack.c.h.b16 %v1329
    %v1530 = vunpack.c.l.b16 %v1330
    %v1531 = vunpack.c.l.b16 %v1331
    %v1532 = vunpack.c.h.b16 %v1331
    %v1533 = vunpack.c.l.b16 %v1332
    %v1534 = vunpack.c.l.b16 %v1333
    %v1535 = vunpack.c.h.b16 %v1333
    %v1536 = vunpack.c.l.b16 %v1334
    %v1537 = vunpack.c.l.b16 %v1335
    %v1538 = vunpack.c.h.b16 %v1335
    %v1539 = vunpack.c.l.b16 %v1336
    %v1540 = vunpack.c.l.b16 %v1337
    %v1541 = vunpack.c.h.b16 %v1337
    %v1542 = vunpack.c.l.b16 %v1338
    %v1543 = vunpack.c.l.b16 %v1339
    %v1544 = vunpack.c.h.b16 %v1339
    %v1545 = vunpack.c.l.b16 %v1340
    %v1546 = vunpack.c.l.b16 %v1341
    %v1547 = vunpack.c.h.b16 %v1341
    %v1548 = vunpack.c.l.b16 %v1342
    %v1549 = vunpack.c.l.b16 %v1343
    %v1550 = vunpack.c.h.b16 %v1343
    %v1551 = vunpack.c.l.b16 %v1344
    %v1552 = vunpack.c.l.b16 %v1345
    %v1553 = vunpack.c.h.b16 %v1345
    %v1554 = vunpack.c.l.b16 %v1346
    %v1555 = vunpack.c.l.b16 %v1347
    %v1556 = vunpack.c.h.b16 %v1347
    %v1557 = vunpack.c.l.b16 %v1348
    %v1558 = vunpack.c.l.b16 %v1349
    %v1559 = vunpack.c.h.b16 %v1349
    %v1560 = vunpack.c.l.b16 %v1350
    %v1561 = vunpack.c.l.b16 %v1351
    %v1562 = vunpack.c.h.b16 %v1351
    %v1563 = vunpack.c.l.b16 %v1352
    %v1564 = vunpack.c.l.b16 %v1353
    %v1565 = vunpack.c.h.b16 %v1353
    %v1566 = vunpack.c.l.b16 %v1354
    %v1567 = vunpack.c.l.b16 %v1355
    %v1568 = vunpack.c.h.b16 %v1355
    %v1569 = vunpack.c.l.b16 %v1356
    %v1570 = vunpack.c.l.b16 %v1357
    %v1571 = vunpack.c.h.b16 %v1357
    %v1572 = vunpack.c.l.b16 %v1358
    %v1573 = vunpack.c.l.b16 %v1359
    %v1574 = vunpack.c.h.b16 %v1359
    %v1575 = vunpack.c.l.b16 %v1360
    %v1576 = vunpack.c.l.b16 %v1361
    %v1577 = vunpack.c.h.b16 %v1361
    %v1578 = vunpack.c.l.b16 %v1362
    %v1579 = vunpack.c.l.b16 %v1363
    %v1580 = vunpack.c.h.b16 %v1363
    %v1581 = vunpack.c.l.b16 %v1364
    %v1582 = vunpack.c.l.b16 %v1365
    %v1583 = vunpack.c.h.b16 %v1365
    %v1584 = vunpack.c.l.b16 %v1366
    %v1585 = vunpack.c.l.b16 %v1367
    %v1586 = vunpack.c.h.b16 %v1367
    %v1587 = vunpack.c.l.b16 %v1368
    %v1588 = vunpack.c.l.b16 %v1369
    %v1589 = vunpack.c.h.b16 %v1369
    %v1590 = vunpack.c.l.b16 %v1370
    %v1591 = vunpack.c.l.b16 %v1371
    %v1592 = vunpack.c.h.b16 %v1371
    %v1593 = vunpack.c.l.b16 %v1372
    %v1594 = vunpack.c.l.b16 %v1373
    %v1595 = vunpack.c.h.b16 %v1373
    %v1596 = vunpack.c.l.b16 %v1374
    %v1597 = vunpack.c.l.b16 %v1375
    %v1598 = vunpack.c.h.b16 %v1375
    %v1599 = vunpack.c.l.b16 %v1376
    %v1600 = vunpack.c.l.b16 %v1377
    %v1601 = vunpack.c.h.b16 %v1377
    %v1602 = vunpack.c.l.b16 %v1378
    %v1603 = vunpack.c.l.b16 %v1379
    %v1604 = vunpack.c.h.b16 %v1379
    %v1605 = vunpack.c.l.b16 %v1380
    %v1606 = vunpack.c.l.b16 %v1381
    %v1607 = vunpack.c.h.b16 %v1381
    %v1608 = vunpack.c.l.b16 %v1382
    %v1609 = vunpack.c.l.b16 %v1383
    %v1610 = vunpack.c.h.b16 %v1383
    %v1611 = vunpack.c.l.b16 %v1384
    %v1612 = vunpack.c.l.b16 %v1385
    %v1613 = vunpack.c.h.b16 %v1385
    %v1614 = vunpack.c.l.b16 %v1386
    %v1615 = vunpack.c.l.b16 %v1387
    %v1616 = vunpack.c.h.b16 %v1387
    %v1617 = vunpack.c.l.b16 %v1388
    %v1618 = vunpack.c.l.b16 %v1389
    %v1619 = vunpack.c.h.b16 %v1389
    %v1620 = vunpack.c.l.b16 %v1390
    %v1621 = vunpack.c.l.b16 %v1391
    %v1622 = vunpack.c.h.b16 %v1391
    %v1623 = vunpack.c.l.b16 %v1392
    %v1624 = vunpack.c.l.b16 %v1393
    %v1625 = vunpack.c.h.b16 %v1393
    %v1626 = vunpack.c.l.b16 %v1394
    %v1627 = vunpack.c.l.b16 %v1395
    %v1628 = vunpack.c.h.b16 %v1395
    %v1629 = vunpack.c.l.b16 %v1396
    %v1630 = vunpack.c.l.b16 %v1397
    %v1631 = vunpack.c.h.b16 %v1397
    %v1632 = vunpack.c.l.b16 %v1398
    %v1633 = vunpack.c.l.b16 %v1399
    %v1634 = vunpack.c.h.b16 %v1399
    %v1635 = vunpack.c.l.b16 %v1400
    %v1636 = vunpack.c.l.b16 %v1401
    %v1637 = vunpack.c.h.b16 %v1401
    %v1638 = vunpack.c.l.b16 %v1402
    %v1639 = vunpack.c.l.b16 %v1403
    %v1640 = vunpack.c.h.b16 %v1403
    %v1641 = vunpack.c.l.b16 %v1404
    %v1642 = vunpack.c.l.b16 %v1405
    %v1643 = vunpack.c.h.b16 %v1405
    %v1644 = vunpack.c.l.b16 %v1406
    %v1645 = vunpack.c.l.b16 %v1407
    %v1646 = vunpack.c.h.b16 %v1407
    %v1647 = vunpack.c.l.b16 %v1408
    %v1648 = vunpack.c.l.b16 %v1409
    %v1649 = vunpack.c.h.b16 %v1409
    %v1650 = vunpack.c.l.b16 %v1410
    %v1651 = vpack.c.b16 %v1510, %v1507
    %v1652 = vpack.c.b16 %v1511, %v1508
    %v1653 = vpack.c.b16 %v1512, %v1509
    %v1654 = vpack.c.b16 %v1516, %v1513
    %v1655 = vpack.c.b16 %v1517, %v1514
    %v1656 = vpack.c.b16 %v1518, %v1515
    %v1657 = vpack.c.b16 %v1522, %v1519
    %v1658 = vpack.c.b16 %v1523, %v1520
    %v1659 = vpack.c.b16 %v1524, %v1521
    %v1660 = vpack.c.b16 %v1528, %v1525
    %v1661 = vpack.c.b16 %v1529, %v1526
    %v1662 = vpack.c.b16 %v1530, %v1527
    %v1663 = vpack.c.b16 %v1534, %v1531
    %v1664 = vpack.c.b16 %v1535, %v1532
    %v1665 = vpack.c.b16 %v1536, %v1533
    %v1666 = vpack.c.b16 %v1540, %v1537
    %v1667 = vpack.c.b16 %v1541, %v1538
    %v1668 = vpack.c.b16 %v1542, %v1539
    %v1669 = vpack.c.b16 %v1546, %v1543
    %v1670 = vpack.c.b16 %v1547, %v1544
    %v1671 = vpack.c.b16 %v1548, %v1545
    %v1672 = vpack.c.b16 %v1552, %v1549
    %v1673 = vpack.c.b16 %v1553, %v1550
    %v1674 = vpack.c.b16 %v1554, %v1551
    %v1675 = vpack.c.b16 %v1558, %v1555
    %v1676 = vpack.c.b16 %v1559, %v1556
    %v1677 = vpack.c.b16 %v1560, %v1557
    %v1678 = vpack.c.b16 %v1564, %v1561
    %v1679 = vpack.c.b16 %v1565, %v1562
    %v1680 = vpack.c.b16 %v1566, %v1563
    %v1681 = vpack.c.b16 %v1570, %v1567
    %v1682 = vpack.c.b16 %v1571, %v1568
    %v1683 = vpack.c.b16 %v1572, %v1569
    %v1684 = vpack.c.b16 %v1576, %v1573
    %v1685 = vpack.c.b16 %v1577, %v1574
    %v1686 = vpack.c.b16 %v1578, %v1575
    %v1687 = vpack.c.b16 %v1582, %v1579
    %v1688 = vpack.c.b16 %v1583, %v1580
    %v1689 = vpack.c.b16 %v1584, %v1581
    %v1690 = vpack.c.b16 %v1588, %v1585
    %v1691 = vpack.c.b16 %v1589, %v1586
    %v1692 = vpack.c.b16 %v1590, %v1587
    %v1693 = vpack.c.b16 %v1594, %v1591
    %v1694 = vpack.c.b16 %v1595, %v1592
    %v1695 = vpack.c.b16 %v1596, %v1593
    %v1696 = vpack.c.b16 %v1600, %v1597
    %v1697 = vpack.c.b16 %v1601, %v1598
    %v1698 = vpack.c.b16 %v1602, %v1599
    %v1699 = vpack.c.b16 %v1606, %v1603
    %v1700 = vpack.c.b16 %v1607, %v1604
    %v1701 = vpack.c.b16 %v1608, %v1605
    %v1702 = vpack.c.b16 %v1612, %v1609
    %v1703 = vpack.c.b16 %v1613, %v1610
    %v1704 = vpack.c.b16 %v1614, %v1611
    %v1705 = vpack.c.b16 %v1618, %v1615
    %v1706 = vpack.c.b16 %v1619, %v1616
    %v1707 = vpack.c.b16 %v1620, %v1617
    %v1708 = vpack.c.b16 %v1624, %v1621
    %v1709 = vpack.c.b16 %v1625, %v1622
    %v1710 = vpack.c.b16 %v1626, %v1623
    %v1711 = vpack.c.b16 %v1630, %v1627
    %v1712 = vpack.c.b16 %v1631, %v1628
    %v1713 = vpack.c.b16 %v1632, %v1629
    %v1714 = vpack.c.b16 %v1636, %v1633
    %v1715 = vpack.c.b16 %v1637, %v1634
    %v1716 = vpack.c.b16 %v1638, %v1635
    %v1717 = vpack.c.b16 %v1642, %v1639
    %v1718 = vpack.c.b16 %v1643, %v1640
    %v1719 = vpack.c.b16 %v1644, %v1641
    %v1720 = vpack.c.b16 %v1648, %v1645
    %v1721 = vpack.c.b16 %v1649, %v1646
    %v1722 = vpack.c.b16 %v1650, %v1647
    %1795 = vmatpush.bf16.msra.mxu0 %v1672
    %1796 = vmatpush.bf16.msra.mxu0 %v1669
    %1797 = vmatpush.bf16.msra.mxu0 %v1666
    %1798 = vmatpush.bf16.msra.mxu0 %v1663
    %1799 = vmatpush.bf16.msra.mxu0 %v1660
    %1800 = vmatpush.bf16.msra.mxu0 %v1657
    %1801 = vmatpush.bf16.msra.mxu0 %v1654
    %1802 = vmatpush.bf16.msra.mxu0 %v1651
    %1803 = vmatmul.bf16.gmra.mxu0 %v1312
    %v1804 = vpop.f32.mrf.mxu0
    %v1805 = vadd.f32 0.0, %v1804
    %v1806 = vpop.f32.mrf.mxu0
    %1807 = vdwg.mxu0
    %1808 = vmatpush.bf16.msra.mxu0 %v1696
    %1809 = vmatpush.bf16.msra.mxu0 %v1693
    %1810 = vmatpush.bf16.msra.mxu0 %v1690
    %1811 = vmatpush.bf16.msra.mxu0 %v1687
    %1812 = vmatpush.bf16.msra.mxu0 %v1684
    %1813 = vmatpush.bf16.msra.mxu0 %v1681
    %1814 = vmatpush.bf16.msra.mxu0 %v1678
    %1815 = vmatpush.bf16.msra.mxu0 %v1675
    %1816 = vmatmul.bf16.gmra.mxu0 %v1313
    %v1817 = vpop.f32.mrf.mxu0
    %v1818 = vadd.f32 %v1805, %v1817
    %v1819 = vpop.f32.mrf.mxu0
    %1820 = vdwg.mxu0
    %1821 = vmatpush.bf16.msra.mxu0 %v1720
    %1822 = vmatpush.bf16.msra.mxu0 %v1717
    %1823 = vmatpush.bf16.msra.mxu0 %v1714
    %1824 = vmatpush.bf16.msra.mxu0 %v1711
    %1825 = vmatpush.bf16.msra.mxu0 %v1708
    %1826 = vmatpush.bf16.msra.mxu0 %v1705
    %1827 = vmatpush.bf16.msra.mxu0 %v1702
    %1828 = vmatpush.bf16.msra.mxu0 %v1699
    %1829 = vmatmul.bf16.gmra.mxu0 %v1314
    %v1830 = vpop.f32.mrf.mxu0
    %v1831 = vadd.f32 %v1818, %v1830
    %v1832 = vpop.f32.mrf.mxu0
    %1833 = vdwg.mxu0
    %1834 = vmatpush.bf16.msra.mxu0 %v1673
    %1835 = vmatpush.bf16.msra.mxu0 %v1670
    %1836 = vmatpush.bf16.msra.mxu0 %v1667
    %1837 = vmatpush.bf16.msra.mxu0 %v1664
    %1838 = vmatpush.bf16.msra.mxu0 %v1661
    %1839 = vmatpush.bf16.msra.mxu0 %v1658
    %1840 = vmatpush.bf16.msra.mxu0 %v1655
    %1841 = vmatpush.bf16.msra.mxu0 %v1652
    %1842 = vmatmul.bf16.gmra.mxu0 %v1312
    %v1843 = vpop.f32.mrf.mxu0
    %v1844 = vadd.f32 0.0, %v1843
    %v1845 = vpop.f32.mrf.mxu0
    %1846 = vdwg.mxu0
    %1847 = vmatpush.bf16.msra.mxu0 %v1697
    %1848 = vmatpush.bf16.msra.mxu0 %v1694
    %1849 = vmatpush.bf16.msra.mxu0 %v1691
    %1850 = vmatpush.bf16.msra.mxu0 %v1688
    %1851 = vmatpush.bf16.msra.mxu0 %v1685
    %1852 = vmatpush.bf16.msra.mxu0 %v1682
    %1853 = vmatpush.bf16.msra.mxu0 %v1679
    %1854 = vmatpush.bf16.msra.mxu0 %v1676
    %1855 = vmatmul.bf16.gmra.mxu0 %v1313
    %v1856 = vpop.f32.mrf.mxu0
    %v1857 = vadd.f32 %v1844, %v1856
    %v1858 = vpop.f32.mrf.mxu0
    %1859 = vdwg.mxu0
    %1860 = vmatpush.bf16.msra.mxu0 %v1721
    %1861 = vmatpush.bf16.msra.mxu0 %v1718
    %1862 = vmatpush.bf16.msra.mxu0 %v1715
    %1863 = vmatpush.bf16.msra.mxu0 %v1712
    %1864 = vmatpush.bf16.msra.mxu0 %v1709
    %1865 = vmatpush.bf16.msra.mxu0 %v1706
    %1866 = vmatpush.bf16.msra.mxu0 %v1703
    %1867 = vmatpush.bf16.msra.mxu0 %v1700
    %1868 = vmatmul.bf16.gmra.mxu0 %v1314
    %v1869 = vpop.f32.mrf.mxu0
    %v1870 = vadd.f32 %v1857, %v1869
    %v1871 = vpop.f32.mrf.mxu0
    %1872 = vdwg.mxu0
    %1873 = vmatpush.bf16.msra.mxu0 %v1674
    %1874 = vmatpush.bf16.msra.mxu0 %v1671
    %1875 = vmatpush.bf16.msra.mxu0 %v1668
    %1876 = vmatpush.bf16.msra.mxu0 %v1665
    %1877 = vmatpush.bf16.msra.mxu0 %v1662
    %1878 = vmatpush.bf16.msra.mxu0 %v1659
    %1879 = vmatpush.bf16.msra.mxu0 %v1656
    %1880 = vmatpush.bf16.msra.mxu0 %v1653
    %1881 = vmatmul.bf16.gmra.mxu0 %v1312
    %v1882 = vpop.f32.mrf.mxu0
    %v1883 = vadd.f32 0.0, %v1882
    %v1884 = vpop.f32.mrf.mxu0
    %1885 = vdwg.mxu0
    %1886 = vmatpush.bf16.msra.mxu0 %v1698
    %1887 = vmatpush.bf16.msra.mxu0 %v1695
    %1888 = vmatpush.bf16.msra.mxu0 %v1692
    %1889 = vmatpush.bf16.msra.mxu0 %v1689
    %1890 = vmatpush.bf16.msra.mxu0 %v1686
    %1891 = vmatpush.bf16.msra.mxu0 %v1683
    %1892 = vmatpush.bf16.msra.mxu0 %v1680
    %1893 = vmatpush.bf16.msra.mxu0 %v1677
    %1894 = vmatmul.bf16.gmra.mxu0 %v1313
    %v1895 = vpop.f32.mrf.mxu0
    %v1896 = vadd.f32 %v1883, %v1895
    %v1897 = vpop.f32.mrf.mxu0
    %1898 = vdwg.mxu0
    %1899 = vmatpush.bf16.msra.mxu0 %v1722
    %1900 = vmatpush.bf16.msra.mxu0 %v1719
    %1901 = vmatpush.bf16.msra.mxu0 %v1716
    %1902 = vmatpush.bf16.msra.mxu0 %v1713
    %1903 = vmatpush.bf16.msra.mxu0 %v1710
    %1904 = vmatpush.bf16.msra.mxu0 %v1707
    %1905 = vmatpush.bf16.msra.mxu0 %v1704
    %1906 = vmatpush.bf16.msra.mxu0 %v1701
    %1907 = vmatmul.bf16.gmra.mxu0 %v1314
    %v1908 = vpop.f32.mrf.mxu0
    %v1909 = vadd.f32 %v1896, %v1908
    %v1910 = vpop.f32.mrf.mxu0
    %1911 = vdwg.mxu0
    %v1912 = vmax.f32 %v1831, 0.0
    %v1913 = vmax.f32 %v1870, 0.0
    %v1914 = vmax.f32 %v1909, 0.0
    %v1915 = vsel %vm929, %v1912, 0.0
    %v1916 = vrot.slane %v1915, 4
    %v1917 = vadd.f32 %v1915, %v1916
    %v1918 = vrot.slane %v1917, 2
    %v1919 = vadd.f32 %v1917, %v1918
    %v1920 = vrot.slane %v1919, 1
    %v1921 = vadd.f32 %v1919, %v1920
    %v1922 = vsel %vm929, %v1913, 0.0
    %v1923 = vrot.slane %v1922, 4
    %v1924 = vadd.f32 %v1922, %v1923
    %v1925 = vrot.slane %v1924, 2
    %v1926 = vadd.f32 %v1924, %v1925
    %v1927 = vrot.slane %v1926, 1
    %v1928 = vadd.f32 %v1926, %v1927
    %v1929 = vsel %vm929, %v1914, 0.0
    %v1930 = vrot.slane %v1929, 4
    %v1931 = vadd.f32 %v1929, %v1930
    %v1932 = vrot.slane %v1931, 2
    %v1933 = vadd.f32 %v1931, %v1932
    %v1934 = vrot.slane %v1933, 1
    %v1935 = vadd.f32 %v1933, %v1934
    %v1936 = vmul.f32 %v1921, %v1293
    %v1937 = vmul.f32 %v1928, %v1293
    %v1938 = vmul.f32 %v1935, %v1293
    %v1942 = vrot.slane %v1937, 7
    %v1943 = vrot.slane %v1938, 6
    %v1944 = vsel %vm1302, %v1936, %v1942
    %v1945 = vsel %vm1304, %v1944, %v1943
    %1947 = vst.msk [vmem:[#allocation8] sm:$0x7] %vm1310, %v1945
    %v1948 = vpack.c.bf16 %v1912, %v1912
    %v1949 = vpack.c.bf16 %v1913, %v1913
    %v1950 = vpack.c.bf16 %v1914, %v1914
    %v1951 = vld [vmem:[#allocation7] sm:$0xff]
    %v1952 = vld [vmem:[#allocation7 + $0x8] sm:$0xf]
    %v1953 = vld [vmem:[#allocation7 + $0xc] sm:$0xff]
    %v1954 = vld [vmem:[#allocation7 + $0x14] sm:$0xf]
    %v1955 = vld [vmem:[#allocation7 + $0x18] sm:$0xff]
    %v1956 = vld [vmem:[#allocation7 + $0x20] sm:$0xf]
    %v1957 = vld [vmem:[#allocation7 + $0x24] sm:$0xff]
    %v1958 = vld [vmem:[#allocation7 + $0x2c] sm:$0xf]
    %v1959 = vld [vmem:[#allocation7 + $0x30] sm:$0xff]
    %v1960 = vld [vmem:[#allocation7 + $0x38] sm:$0xf]
    %v1961 = vld [vmem:[#allocation7 + $0x3c] sm:$0xff]
    %v1962 = vld [vmem:[#allocation7 + $0x44] sm:$0xf]
    %v1963 = vld [vmem:[#allocation7 + $0x48] sm:$0xff]
    %v1964 = vld [vmem:[#allocation7 + $0x50] sm:$0xf]
    %v1965 = vld [vmem:[#allocation7 + $0x54] sm:$0xff]
    %v1966 = vld [vmem:[#allocation7 + $0x5c] sm:$0xf]
    %v1967 = vld [vmem:[#allocation7 + $0x60] sm:$0xff]
    %v1968 = vld [vmem:[#allocation7 + $0x68] sm:$0xf]
    %v1969 = vld [vmem:[#allocation7 + $0x6c] sm:$0xff]
    %v1970 = vld [vmem:[#allocation7 + $0x74] sm:$0xf]
    %v1971 = vld [vmem:[#allocation7 + $0x78] sm:$0xff]
    %v1972 = vld [vmem:[#allocation7 + $0x80] sm:$0xf]
    %v1973 = vld [vmem:[#allocation7 + $0x84] sm:$0xff]
    %v1974 = vld [vmem:[#allocation7 + $0x8c] sm:$0xf]
    %v1975 = vld [vmem:[#allocation7 + $0x90] sm:$0xff]
    %v1976 = vld [vmem:[#allocation7 + $0x98] sm:$0xf]
    %v1977 = vld [vmem:[#allocation7 + $0x9c] sm:$0xff]
    %v1978 = vld [vmem:[#allocation7 + $0xa4] sm:$0xf]
    %v1979 = vld [vmem:[#allocation7 + $0xa8] sm:$0xff]
    %v1980 = vld [vmem:[#allocation7 + $0xb0] sm:$0xf]
    %v1981 = vld [vmem:[#allocation7 + $0xb4] sm:$0xff]
    %v1982 = vld [vmem:[#allocation7 + $0xbc] sm:$0xf]
    %v1983 = vld [vmem:[#allocation7 + $0xc0] sm:$0xff]
    %v1984 = vld [vmem:[#allocation7 + $0xc8] sm:$0xf]
    %v1985 = vld [vmem:[#allocation7 + $0xcc] sm:$0xff]
    %v1986 = vld [vmem:[#allocation7 + $0xd4] sm:$0xf]
    %v1987 = vld [vmem:[#allocation7 + $0xd8] sm:$0xff]
    %v1988 = vld [vmem:[#allocation7 + $0xe0] sm:$0xf]
    %v1989 = vld [vmem:[#allocation7 + $0xe4] sm:$0xff]
    %v1990 = vld [vmem:[#allocation7 + $0xec] sm:$0xf]
    %v1991 = vld [vmem:[#allocation7 + $0xf0] sm:$0xff]
    %v1992 = vld [vmem:[#allocation7 + $0xf8] sm:$0xf]
    %v1993 = vld [vmem:[#allocation7 + $0xfc] sm:$0xff]
    %v1994 = vld [vmem:[#allocation7 + $0x104] sm:$0xf]
    %v1995 = vld [vmem:[#allocation7 + $0x108] sm:$0xff]
    %v1996 = vld [vmem:[#allocation7 + $0x110] sm:$0xf]
    %v1997 = vld [vmem:[#allocation7 + $0x114] sm:$0xff]
    %v1998 = vld [vmem:[#allocation7 + $0x11c] sm:$0xf]
    %v1999 = vld [vmem:[#allocation7 + $0x120] sm:$0xff]
    %v2000 = vld [vmem:[#allocation7 + $0x128] sm:$0xf]
    %v2001 = vld [vmem:[#allocation7 + $0x12c] sm:$0xff]
    %v2002 = vld [vmem:[#allocation7 + $0x134] sm:$0xf]
    %v2003 = vld [vmem:[#allocation7 + $0x138] sm:$0xff]
    %v2004 = vld [vmem:[#allocation7 + $0x140] sm:$0xf]
    %v2005 = vld [vmem:[#allocation7 + $0x144] sm:$0xff]
    %v2006 = vld [vmem:[#allocation7 + $0x14c] sm:$0xf]
    %v2007 = vld [vmem:[#allocation7 + $0x150] sm:$0xff]
    %v2008 = vld [vmem:[#allocation7 + $0x158] sm:$0xf]
    %v2009 = vld [vmem:[#allocation7 + $0x15c] sm:$0xff]
    %v2010 = vld [vmem:[#allocation7 + $0x164] sm:$0xf]
    %v2011 = vld [vmem:[#allocation7 + $0x168] sm:$0xff]
    %v2012 = vld [vmem:[#allocation7 + $0x170] sm:$0xf]
    %v2013 = vld [vmem:[#allocation7 + $0x174] sm:$0xff]
    %v2014 = vld [vmem:[#allocation7 + $0x17c] sm:$0xf]
    %v2015 = vld [vmem:[#allocation7 + $0x180] sm:$0xff]
    %v2016 = vld [vmem:[#allocation7 + $0x188] sm:$0xf]
    %v2017 = vld [vmem:[#allocation7 + $0x18c] sm:$0xff]
    %v2018 = vld [vmem:[#allocation7 + $0x194] sm:$0xf]
    %v2019 = vld [vmem:[#allocation7 + $0x198] sm:$0xff]
    %v2020 = vld [vmem:[#allocation7 + $0x1a0] sm:$0xf]
    %v2021 = vld [vmem:[#allocation7 + $0x1a4] sm:$0xff]
    %v2022 = vld [vmem:[#allocation7 + $0x1ac] sm:$0xf]
    %v2023 = vld [vmem:[#allocation7 + $0x1b0] sm:$0xff]
    %v2024 = vld [vmem:[#allocation7 + $0x1b8] sm:$0xf]
    %v2025 = vld [vmem:[#allocation7 + $0x1bc] sm:$0xff]
    %v2026 = vld [vmem:[#allocation7 + $0x1c4] sm:$0xf]
    %v2027 = vld [vmem:[#allocation7 + $0x1c8] sm:$0xff]
    %v2028 = vld [vmem:[#allocation7 + $0x1d0] sm:$0xf]
    %v2029 = vld [vmem:[#allocation7 + $0x1d4] sm:$0xff]
    %v2030 = vld [vmem:[#allocation7 + $0x1dc] sm:$0xf]
    %v2031 = vld [vmem:[#allocation7 + $0x1e0] sm:$0xff]
    %v2032 = vld [vmem:[#allocation7 + $0x1e8] sm:$0xf]
    %v2033 = vld [vmem:[#allocation7 + $0x1ec] sm:$0xff]
    %v2034 = vld [vmem:[#allocation7 + $0x1f4] sm:$0xf]
    %v2035 = vld [vmem:[#allocation7 + $0x1f8] sm:$0xff]
    %v2036 = vld [vmem:[#allocation7 + $0x200] sm:$0xf]
    %v2037 = vld [vmem:[#allocation7 + $0x204] sm:$0xff]
    %v2038 = vld [vmem:[#allocation7 + $0x20c] sm:$0xf]
    %v2039 = vld [vmem:[#allocation7 + $0x210] sm:$0xff]
    %v2040 = vld [vmem:[#allocation7 + $0x218] sm:$0xf]
    %v2041 = vld [vmem:[#allocation7 + $0x21c] sm:$0xff]
    %v2042 = vld [vmem:[#allocation7 + $0x224] sm:$0xf]
    %v2043 = vld [vmem:[#allocation7 + $0x228] sm:$0xff]
    %v2044 = vld [vmem:[#allocation7 + $0x230] sm:$0xf]
    %v2045 = vld [vmem:[#allocation7 + $0x234] sm:$0xff]
    %v2046 = vld [vmem:[#allocation7 + $0x23c] sm:$0xf]
    %v2143 = vunpack.c.l.b16 %v1951
    %v2144 = vunpack.c.h.b16 %v1951
    %v2145 = vunpack.c.l.b16 %v1952
    %v2146 = vunpack.c.l.b16 %v1953
    %v2147 = vunpack.c.h.b16 %v1953
    %v2148 = vunpack.c.l.b16 %v1954
    %v2149 = vunpack.c.l.b16 %v1955
    %v2150 = vunpack.c.h.b16 %v1955
    %v2151 = vunpack.c.l.b16 %v1956
    %v2152 = vunpack.c.l.b16 %v1957
    %v2153 = vunpack.c.h.b16 %v1957
    %v2154 = vunpack.c.l.b16 %v1958
    %v2155 = vunpack.c.l.b16 %v1959
    %v2156 = vunpack.c.h.b16 %v1959
    %v2157 = vunpack.c.l.b16 %v1960
    %v2158 = vunpack.c.l.b16 %v1961
    %v2159 = vunpack.c.h.b16 %v1961
    %v2160 = vunpack.c.l.b16 %v1962
    %v2161 = vunpack.c.l.b16 %v1963
    %v2162 = vunpack.c.h.b16 %v1963
    %v2163 = vunpack.c.l.b16 %v1964
    %v2164 = vunpack.c.l.b16 %v1965
    %v2165 = vunpack.c.h.b16 %v1965
    %v2166 = vunpack.c.l.b16 %v1966
    %v2167 = vunpack.c.l.b16 %v1967
    %v2168 = vunpack.c.h.b16 %v1967
    %v2169 = vunpack.c.l.b16 %v1968
    %v2170 = vunpack.c.l.b16 %v1969
    %v2171 = vunpack.c.h.b16 %v1969
    %v2172 = vunpack.c.l.b16 %v1970
    %v2173 = vunpack.c.l.b16 %v1971
    %v2174 = vunpack.c.h.b16 %v1971
    %v2175 = vunpack.c.l.b16 %v1972
    %v2176 = vunpack.c.l.b16 %v1973
    %v2177 = vunpack.c.h.b16 %v1973
    %v2178 = vunpack.c.l.b16 %v1974
    %v2179 = vunpack.c.l.b16 %v1975
    %v2180 = vunpack.c.h.b16 %v1975
    %v2181 = vunpack.c.l.b16 %v1976
    %v2182 = vunpack.c.l.b16 %v1977
    %v2183 = vunpack.c.h.b16 %v1977
    %v2184 = vunpack.c.l.b16 %v1978
    %v2185 = vunpack.c.l.b16 %v1979
    %v2186 = vunpack.c.h.b16 %v1979
    %v2187 = vunpack.c.l.b16 %v1980
    %v2188 = vunpack.c.l.b16 %v1981
    %v2189 = vunpack.c.h.b16 %v1981
    %v2190 = vunpack.c.l.b16 %v1982
    %v2191 = vunpack.c.l.b16 %v1983
    %v2192 = vunpack.c.h.b16 %v1983
    %v2193 = vunpack.c.l.b16 %v1984
    %v2194 = vunpack.c.l.b16 %v1985
    %v2195 = vunpack.c.h.b16 %v1985
    %v2196 = vunpack.c.l.b16 %v1986
    %v2197 = vunpack.c.l.b16 %v1987
    %v2198 = vunpack.c.h.b16 %v1987
    %v2199 = vunpack.c.l.b16 %v1988
    %v2200 = vunpack.c.l.b16 %v1989
    %v2201 = vunpack.c.h.b16 %v1989
    %v2202 = vunpack.c.l.b16 %v1990
    %v2203 = vunpack.c.l.b16 %v1991
    %v2204 = vunpack.c.h.b16 %v1991
    %v2205 = vunpack.c.l.b16 %v1992
    %v2206 = vunpack.c.l.b16 %v1993
    %v2207 = vunpack.c.h.b16 %v1993
    %v2208 = vunpack.c.l.b16 %v1994
    %v2209 = vunpack.c.l.b16 %v1995
    %v2210 = vunpack.c.h.b16 %v1995
    %v2211 = vunpack.c.l.b16 %v1996
    %v2212 = vunpack.c.l.b16 %v1997
    %v2213 = vunpack.c.h.b16 %v1997
    %v2214 = vunpack.c.l.b16 %v1998
    %v2215 = vunpack.c.l.b16 %v1999
    %v2216 = vunpack.c.h.b16 %v1999
    %v2217 = vunpack.c.l.b16 %v2000
    %v2218 = vunpack.c.l.b16 %v2001
    %v2219 = vunpack.c.h.b16 %v2001
    %v2220 = vunpack.c.l.b16 %v2002
    %v2221 = vunpack.c.l.b16 %v2003
    %v2222 = vunpack.c.h.b16 %v2003
    %v2223 = vunpack.c.l.b16 %v2004
    %v2224 = vunpack.c.l.b16 %v2005
    %v2225 = vunpack.c.h.b16 %v2005
    %v2226 = vunpack.c.l.b16 %v2006
    %v2227 = vunpack.c.l.b16 %v2007
    %v2228 = vunpack.c.h.b16 %v2007
    %v2229 = vunpack.c.l.b16 %v2008
    %v2230 = vunpack.c.l.b16 %v2009
    %v2231 = vunpack.c.h.b16 %v2009
    %v2232 = vunpack.c.l.b16 %v2010
    %v2233 = vunpack.c.l.b16 %v2011
    %v2234 = vunpack.c.h.b16 %v2011
    %v2235 = vunpack.c.l.b16 %v2012
    %v2236 = vunpack.c.l.b16 %v2013
    %v2237 = vunpack.c.h.b16 %v2013
    %v2238 = vunpack.c.l.b16 %v2014
    %v2239 = vunpack.c.l.b16 %v2015
    %v2240 = vunpack.c.h.b16 %v2015
    %v2241 = vunpack.c.l.b16 %v2016
    %v2242 = vunpack.c.l.b16 %v2017
    %v2243 = vunpack.c.h.b16 %v2017
    %v2244 = vunpack.c.l.b16 %v2018
    %v2245 = vunpack.c.l.b16 %v2019
    %v2246 = vunpack.c.h.b16 %v2019
    %v2247 = vunpack.c.l.b16 %v2020
    %v2248 = vunpack.c.l.b16 %v2021
    %v2249 = vunpack.c.h.b16 %v2021
    %v2250 = vunpack.c.l.b16 %v2022
    %v2251 = vunpack.c.l.b16 %v2023
    %v2252 = vunpack.c.h.b16 %v2023
    %v2253 = vunpack.c.l.b16 %v2024
    %v2254 = vunpack.c.l.b16 %v2025
    %v2255 = vunpack.c.h.b16 %v2025
    %v2256 = vunpack.c.l.b16 %v2026
    %v2257 = vunpack.c.l.b16 %v2027
    %v2258 = vunpack.c.h.b16 %v2027
    %v2259 = vunpack.c.l.b16 %v2028
    %v2260 = vunpack.c.l.b16 %v2029
    %v2261 = vunpack.c.h.b16 %v2029
    %v2262 = vunpack.c.l.b16 %v2030
    %v2263 = vunpack.c.l.b16 %v2031
    %v2264 = vunpack.c.h.b16 %v2031
    %v2265 = vunpack.c.l.b16 %v2032
    %v2266 = vunpack.c.l.b16 %v2033
    %v2267 = vunpack.c.h.b16 %v2033
    %v2268 = vunpack.c.l.b16 %v2034
    %v2269 = vunpack.c.l.b16 %v2035
    %v2270 = vunpack.c.h.b16 %v2035
    %v2271 = vunpack.c.l.b16 %v2036
    %v2272 = vunpack.c.l.b16 %v2037
    %v2273 = vunpack.c.h.b16 %v2037
    %v2274 = vunpack.c.l.b16 %v2038
    %v2275 = vunpack.c.l.b16 %v2039
    %v2276 = vunpack.c.h.b16 %v2039
    %v2277 = vunpack.c.l.b16 %v2040
    %v2278 = vunpack.c.l.b16 %v2041
    %v2279 = vunpack.c.h.b16 %v2041
    %v2280 = vunpack.c.l.b16 %v2042
    %v2281 = vunpack.c.l.b16 %v2043
    %v2282 = vunpack.c.h.b16 %v2043
    %v2283 = vunpack.c.l.b16 %v2044
    %v2284 = vunpack.c.l.b16 %v2045
    %v2285 = vunpack.c.h.b16 %v2045
    %v2286 = vunpack.c.l.b16 %v2046
    %v2287 = vpack.c.b16 %v2146, %v2143
    %v2288 = vpack.c.b16 %v2147, %v2144
    %v2289 = vpack.c.b16 %v2148, %v2145
    %v2290 = vpack.c.b16 %v2152, %v2149
    %v2291 = vpack.c.b16 %v2153, %v2150
    %v2292 = vpack.c.b16 %v2154, %v2151
    %v2293 = vpack.c.b16 %v2158, %v2155
    %v2294 = vpack.c.b16 %v2159, %v2156
    %v2295 = vpack.c.b16 %v2160, %v2157
    %v2296 = vpack.c.b16 %v2164, %v2161
    %v2297 = vpack.c.b16 %v2165, %v2162
    %v2298 = vpack.c.b16 %v2166, %v2163
    %v2299 = vpack.c.b16 %v2170, %v2167
    %v2300 = vpack.c.b16 %v2171, %v2168
    %v2301 = vpack.c.b16 %v2172, %v2169
    %v2302 = vpack.c.b16 %v2176, %v2173
    %v2303 = vpack.c.b16 %v2177, %v2174
    %v2304 = vpack.c.b16 %v2178, %v2175
    %v2305 = vpack.c.b16 %v2182, %v2179
    %v2306 = vpack.c.b16 %v2183, %v2180
    %v2307 = vpack.c.b16 %v2184, %v2181
    %v2308 = vpack.c.b16 %v2188, %v2185
    %v2309 = vpack.c.b16 %v2189, %v2186
    %v2310 = vpack.c.b16 %v2190, %v2187
    %v2311 = vpack.c.b16 %v2194, %v2191
    %v2312 = vpack.c.b16 %v2195, %v2192
    %v2313 = vpack.c.b16 %v2196, %v2193
    %v2314 = vpack.c.b16 %v2200, %v2197
    %v2315 = vpack.c.b16 %v2201, %v2198
    %v2316 = vpack.c.b16 %v2202, %v2199
    %v2317 = vpack.c.b16 %v2206, %v2203
    %v2318 = vpack.c.b16 %v2207, %v2204
    %v2319 = vpack.c.b16 %v2208, %v2205
    %v2320 = vpack.c.b16 %v2212, %v2209
    %v2321 = vpack.c.b16 %v2213, %v2210
    %v2322 = vpack.c.b16 %v2214, %v2211
    %v2323 = vpack.c.b16 %v2218, %v2215
    %v2324 = vpack.c.b16 %v2219, %v2216
    %v2325 = vpack.c.b16 %v2220, %v2217
    %v2326 = vpack.c.b16 %v2224, %v2221
    %v2327 = vpack.c.b16 %v2225, %v2222
    %v2328 = vpack.c.b16 %v2226, %v2223
    %v2329 = vpack.c.b16 %v2230, %v2227
    %v2330 = vpack.c.b16 %v2231, %v2228
    %v2331 = vpack.c.b16 %v2232, %v2229
    %v2332 = vpack.c.b16 %v2236, %v2233
    %v2333 = vpack.c.b16 %v2237, %v2234
    %v2334 = vpack.c.b16 %v2238, %v2235
    %v2335 = vpack.c.b16 %v2242, %v2239
    %v2336 = vpack.c.b16 %v2243, %v2240
    %v2337 = vpack.c.b16 %v2244, %v2241
    %v2338 = vpack.c.b16 %v2248, %v2245
    %v2339 = vpack.c.b16 %v2249, %v2246
    %v2340 = vpack.c.b16 %v2250, %v2247
    %v2341 = vpack.c.b16 %v2254, %v2251
    %v2342 = vpack.c.b16 %v2255, %v2252
    %v2343 = vpack.c.b16 %v2256, %v2253
    %v2344 = vpack.c.b16 %v2260, %v2257
    %v2345 = vpack.c.b16 %v2261, %v2258
    %v2346 = vpack.c.b16 %v2262, %v2259
    %v2347 = vpack.c.b16 %v2266, %v2263
    %v2348 = vpack.c.b16 %v2267, %v2264
    %v2349 = vpack.c.b16 %v2268, %v2265
    %v2350 = vpack.c.b16 %v2272, %v2269
    %v2351 = vpack.c.b16 %v2273, %v2270
    %v2352 = vpack.c.b16 %v2274, %v2271
    %v2353 = vpack.c.b16 %v2278, %v2275
    %v2354 = vpack.c.b16 %v2279, %v2276
    %v2355 = vpack.c.b16 %v2280, %v2277
    %v2356 = vpack.c.b16 %v2284, %v2281
    %v2357 = vpack.c.b16 %v2285, %v2282
    %v2358 = vpack.c.b16 %v2286, %v2283
    %2431 = vmatpush.bf16.msra.mxu0 %v2308
    %2432 = vmatpush.bf16.msra.mxu0 %v2305
    %2433 = vmatpush.bf16.msra.mxu0 %v2302
    %2434 = vmatpush.bf16.msra.mxu0 %v2299
    %2435 = vmatpush.bf16.msra.mxu0 %v2296
    %2436 = vmatpush.bf16.msra.mxu0 %v2293
    %2437 = vmatpush.bf16.msra.mxu0 %v2290
    %2438 = vmatpush.bf16.msra.mxu0 %v2287
    %2439 = vmatmul.bf16.gmra.mxu0 %v1948
    %v2440 = vpop.f32.mrf.mxu0
    %v2441 = vadd.f32 0.0, %v2440
    %v2442 = vpop.f32.mrf.mxu0
    %2443 = vdwg.mxu0
    %2444 = vmatpush.bf16.msra.mxu0 %v2332
    %2445 = vmatpush.bf16.msra.mxu0 %v2329
    %2446 = vmatpush.bf16.msra.mxu0 %v2326
    %2447 = vmatpush.bf16.msra.mxu0 %v2323
    %2448 = vmatpush.bf16.msra.mxu0 %v2320
    %2449 = vmatpush.bf16.msra.mxu0 %v2317
    %2450 = vmatpush.bf16.msra.mxu0 %v2314
    %2451 = vmatpush.bf16.msra.mxu0 %v2311
    %2452 = vmatmul.bf16.gmra.mxu0 %v1949
    %v2453 = vpop.f32.mrf.mxu0
    %v2454 = vadd.f32 %v2441, %v2453
    %v2455 = vpop.f32.mrf.mxu0
    %2456 = vdwg.mxu0
    %2457 = vmatpush.bf16.msra.mxu0 %v2356
    %2458 = vmatpush.bf16.msra.mxu0 %v2353
    %2459 = vmatpush.bf16.msra.mxu0 %v2350
    %2460 = vmatpush.bf16.msra.mxu0 %v2347
    %2461 = vmatpush.bf16.msra.mxu0 %v2344
    %2462 = vmatpush.bf16.msra.mxu0 %v2341
    %2463 = vmatpush.bf16.msra.mxu0 %v2338
    %2464 = vmatpush.bf16.msra.mxu0 %v2335
    %2465 = vmatmul.bf16.gmra.mxu0 %v1950
    %v2466 = vpop.f32.mrf.mxu0
    %v2467 = vadd.f32 %v2454, %v2466
    %v2468 = vpop.f32.mrf.mxu0
    %2469 = vdwg.mxu0
    %2470 = vmatpush.bf16.msra.mxu0 %v2309
    %2471 = vmatpush.bf16.msra.mxu0 %v2306
    %2472 = vmatpush.bf16.msra.mxu0 %v2303
    %2473 = vmatpush.bf16.msra.mxu0 %v2300
    %2474 = vmatpush.bf16.msra.mxu0 %v2297
    %2475 = vmatpush.bf16.msra.mxu0 %v2294
    %2476 = vmatpush.bf16.msra.mxu0 %v2291
    %2477 = vmatpush.bf16.msra.mxu0 %v2288
    %2478 = vmatmul.bf16.gmra.mxu0 %v1948
    %v2479 = vpop.f32.mrf.mxu0
    %v2480 = vadd.f32 0.0, %v2479
    %v2481 = vpop.f32.mrf.mxu0
    %2482 = vdwg.mxu0
    %2483 = vmatpush.bf16.msra.mxu0 %v2333
    %2484 = vmatpush.bf16.msra.mxu0 %v2330
    %2485 = vmatpush.bf16.msra.mxu0 %v2327
    %2486 = vmatpush.bf16.msra.mxu0 %v2324
    %2487 = vmatpush.bf16.msra.mxu0 %v2321
    %2488 = vmatpush.bf16.msra.mxu0 %v2318
    %2489 = vmatpush.bf16.msra.mxu0 %v2315
    %2490 = vmatpush.bf16.msra.mxu0 %v2312
    %2491 = vmatmul.bf16.gmra.mxu0 %v1949
    %v2492 = vpop.f32.mrf.mxu0
    %v2493 = vadd.f32 %v2480, %v2492
    %v2494 = vpop.f32.mrf.mxu0
    %2495 = vdwg.mxu0
    %2496 = vmatpush.bf16.msra.mxu0 %v2357
    %2497 = vmatpush.bf16.msra.mxu0 %v2354
    %2498 = vmatpush.bf16.msra.mxu0 %v2351
    %2499 = vmatpush.bf16.msra.mxu0 %v2348
    %2500 = vmatpush.bf16.msra.mxu0 %v2345
    %2501 = vmatpush.bf16.msra.mxu0 %v2342
    %2502 = vmatpush.bf16.msra.mxu0 %v2339
    %2503 = vmatpush.bf16.msra.mxu0 %v2336
    %2504 = vmatmul.bf16.gmra.mxu0 %v1950
    %v2505 = vpop.f32.mrf.mxu0
    %v2506 = vadd.f32 %v2493, %v2505
    %v2507 = vpop.f32.mrf.mxu0
    %2508 = vdwg.mxu0
    %2509 = vmatpush.bf16.msra.mxu0 %v2310
    %2510 = vmatpush.bf16.msra.mxu0 %v2307
    %2511 = vmatpush.bf16.msra.mxu0 %v2304
    %2512 = vmatpush.bf16.msra.mxu0 %v2301
    %2513 = vmatpush.bf16.msra.mxu0 %v2298
    %2514 = vmatpush.bf16.msra.mxu0 %v2295
    %2515 = vmatpush.bf16.msra.mxu0 %v2292
    %2516 = vmatpush.bf16.msra.mxu0 %v2289
    %2517 = vmatmul.bf16.gmra.mxu0 %v1948
    %v2518 = vpop.f32.mrf.mxu0
    %v2519 = vadd.f32 0.0, %v2518
    %v2520 = vpop.f32.mrf.mxu0
    %2521 = vdwg.mxu0
    %2522 = vmatpush.bf16.msra.mxu0 %v2334
    %2523 = vmatpush.bf16.msra.mxu0 %v2331
    %2524 = vmatpush.bf16.msra.mxu0 %v2328
    %2525 = vmatpush.bf16.msra.mxu0 %v2325
    %2526 = vmatpush.bf16.msra.mxu0 %v2322
    %2527 = vmatpush.bf16.msra.mxu0 %v2319
    %2528 = vmatpush.bf16.msra.mxu0 %v2316
    %2529 = vmatpush.bf16.msra.mxu0 %v2313
    %2530 = vmatmul.bf16.gmra.mxu0 %v1949
    %v2531 = vpop.f32.mrf.mxu0
    %v2532 = vadd.f32 %v2519, %v2531
    %v2533 = vpop.f32.mrf.mxu0
    %2534 = vdwg.mxu0
    %2535 = vmatpush.bf16.msra.mxu0 %v2358
    %2536 = vmatpush.bf16.msra.mxu0 %v2355
    %2537 = vmatpush.bf16.msra.mxu0 %v2352
    %2538 = vmatpush.bf16.msra.mxu0 %v2349
    %2539 = vmatpush.bf16.msra.mxu0 %v2346
    %2540 = vmatpush.bf16.msra.mxu0 %v2343
    %2541 = vmatpush.bf16.msra.mxu0 %v2340
    %2542 = vmatpush.bf16.msra.mxu0 %v2337
    %2543 = vmatmul.bf16.gmra.mxu0 %v1950
    %v2544 = vpop.f32.mrf.mxu0
    %v2545 = vadd.f32 %v2532, %v2544
    %v2546 = vpop.f32.mrf.mxu0
    %2547 = vdwg.mxu0
    %v2548 = vmax.f32 %v2467, 0.0
    %v2549 = vmax.f32 %v2506, 0.0
    %v2550 = vmax.f32 %v2545, 0.0
    %v2551 = vsel %vm929, %v2548, 0.0
    %v2552 = vrot.slane %v2551, 4
    %v2553 = vadd.f32 %v2551, %v2552
    %v2554 = vrot.slane %v2553, 2
    %v2555 = vadd.f32 %v2553, %v2554
    %v2556 = vrot.slane %v2555, 1
    %v2557 = vadd.f32 %v2555, %v2556
    %v2558 = vsel %vm929, %v2549, 0.0
    %v2559 = vrot.slane %v2558, 4
    %v2560 = vadd.f32 %v2558, %v2559
    %v2561 = vrot.slane %v2560, 2
    %v2562 = vadd.f32 %v2560, %v2561
    %v2563 = vrot.slane %v2562, 1
    %v2564 = vadd.f32 %v2562, %v2563
    %v2565 = vsel %vm929, %v2550, 0.0
    %v2566 = vrot.slane %v2565, 4
    %v2567 = vadd.f32 %v2565, %v2566
    %v2568 = vrot.slane %v2567, 2
    %v2569 = vadd.f32 %v2567, %v2568
    %v2570 = vrot.slane %v2569, 1
    %v2571 = vadd.f32 %v2569, %v2570
    %v2572 = vmul.f32 %v2557, %v1293
    %v2573 = vmul.f32 %v2564, %v1293
    %v2574 = vmul.f32 %v2571, %v1293
    %v2578 = vrot.slane %v2573, 7
    %v2579 = vrot.slane %v2574, 6
    %v2580 = vsel %vm1302, %v2572, %v2578
    %v2581 = vsel %vm1304, %v2580, %v2579
    %2583 = vst.msk [vmem:[#allocation9] sm:$0x7] %vm1310, %v2581
    %v2584 = vpack.c.bf16 %v2548, %v2548
    %v2585 = vpack.c.bf16 %v2549, %v2549
    %v2586 = vpack.c.bf16 %v2550, %v2550
    %v2587 = vld [vmem:[%s9] sm:$0xf]
    %v2588 = vld [vmem:[%s9 + $0x4] sm:$0xf]
    %v2589 = vld [vmem:[%s9 + $0x8] sm:$0xf]
    %v2590 = vld [vmem:[%s9 + $0xc] sm:$0xf]
    %v2591 = vld [vmem:[%s9 + $0x10] sm:$0xf]
    %v2592 = vld [vmem:[%s9 + $0x14] sm:$0xf]
    %v2593 = vld [vmem:[%s9 + $0x18] sm:$0xf]
    %v2594 = vld [vmem:[%s9 + $0x1c] sm:$0xf]
    %v2595 = vld [vmem:[%s9 + $0x20] sm:$0xf]
    %v2596 = vld [vmem:[%s9 + $0x24] sm:$0xf]
    %v2597 = vld [vmem:[%s9 + $0x28] sm:$0xf]
    %v2598 = vld [vmem:[%s9 + $0x2c] sm:$0xf]
    %v2599 = vld [vmem:[%s9 + $0x30] sm:$0xf]
    %v2600 = vld [vmem:[%s9 + $0x34] sm:$0xf]
    %v2601 = vld [vmem:[%s9 + $0x38] sm:$0xf]
    %v2602 = vld [vmem:[%s9 + $0x3c] sm:$0xf]
    %v2603 = vld [vmem:[%s9 + $0x40] sm:$0xf]
    %v2604 = vld [vmem:[%s9 + $0x44] sm:$0xf]
    %v2605 = vld [vmem:[%s9 + $0x48] sm:$0xf]
    %v2606 = vld [vmem:[%s9 + $0x4c] sm:$0xf]
    %v2607 = vld [vmem:[%s9 + $0x50] sm:$0xf]
    %v2608 = vld [vmem:[%s9 + $0x54] sm:$0xf]
    %v2609 = vld [vmem:[%s9 + $0x58] sm:$0xf]
    %v2610 = vld [vmem:[%s9 + $0x5c] sm:$0xf]
    %v2611 = vld [vmem:[%s9 + $0x60] sm:$0xf]
    %v2612 = vld [vmem:[%s9 + $0x64] sm:$0xf]
    %v2613 = vld [vmem:[%s9 + $0x68] sm:$0xf]
    %v2614 = vld [vmem:[%s9 + $0x6c] sm:$0xf]
    %v2615 = vld [vmem:[%s9 + $0x70] sm:$0xf]
    %v2616 = vld [vmem:[%s9 + $0x74] sm:$0xf]
    %v2617 = vld [vmem:[%s9 + $0x78] sm:$0xf]
    %v2618 = vld [vmem:[%s9 + $0x7c] sm:$0xf]
    %v2619 = vld [vmem:[%s9 + $0x80] sm:$0xf]
    %v2620 = vld [vmem:[%s9 + $0x84] sm:$0xf]
    %v2621 = vld [vmem:[%s9 + $0x88] sm:$0xf]
    %v2622 = vld [vmem:[%s9 + $0x8c] sm:$0xf]
    %v2623 = vld [vmem:[%s9 + $0x90] sm:$0xf]
    %v2624 = vld [vmem:[%s9 + $0x94] sm:$0xf]
    %v2625 = vld [vmem:[%s9 + $0x98] sm:$0xf]
    %v2626 = vld [vmem:[%s9 + $0x9c] sm:$0xf]
    %v2627 = vld [vmem:[%s9 + $0xa0] sm:$0xf]
    %v2628 = vld [vmem:[%s9 + $0xa4] sm:$0xf]
    %v2629 = vld [vmem:[%s9 + $0xa8] sm:$0xf]
    %v2630 = vld [vmem:[%s9 + $0xac] sm:$0xf]
    %v2631 = vld [vmem:[%s9 + $0xb0] sm:$0xf]
    %v2632 = vld [vmem:[%s9 + $0xb4] sm:$0xf]
    %v2633 = vld [vmem:[%s9 + $0xb8] sm:$0xf]
    %v2634 = vld [vmem:[%s9 + $0xbc] sm:$0xf]
    %v2635 = vld [vmem:[%s10] sm:$0x1]
    %v2637 = vperm.slane %v2635, 0
    %v2687 = vunpack.c.l.b16 %v2587
    %v2688 = vunpack.c.l.b16 %v2588
    %v2689 = vunpack.c.l.b16 %v2589
    %v2690 = vunpack.c.l.b16 %v2590
    %v2691 = vunpack.c.l.b16 %v2591
    %v2692 = vunpack.c.l.b16 %v2592
    %v2693 = vunpack.c.l.b16 %v2593
    %v2694 = vunpack.c.l.b16 %v2594
    %v2695 = vunpack.c.l.b16 %v2595
    %v2696 = vunpack.c.l.b16 %v2596
    %v2697 = vunpack.c.l.b16 %v2597
    %v2698 = vunpack.c.l.b16 %v2598
    %v2699 = vunpack.c.l.b16 %v2599
    %v2700 = vunpack.c.l.b16 %v2600
    %v2701 = vunpack.c.l.b16 %v2601
    %v2702 = vunpack.c.l.b16 %v2602
    %v2703 = vunpack.c.l.b16 %v2603
    %v2704 = vunpack.c.l.b16 %v2604
    %v2705 = vunpack.c.l.b16 %v2605
    %v2706 = vunpack.c.l.b16 %v2606
    %v2707 = vunpack.c.l.b16 %v2607
    %v2708 = vunpack.c.l.b16 %v2608
    %v2709 = vunpack.c.l.b16 %v2609
    %v2710 = vunpack.c.l.b16 %v2610
    %v2711 = vunpack.c.l.b16 %v2611
    %v2712 = vunpack.c.l.b16 %v2612
    %v2713 = vunpack.c.l.b16 %v2613
    %v2714 = vunpack.c.l.b16 %v2614
    %v2715 = vunpack.c.l.b16 %v2615
    %v2716 = vunpack.c.l.b16 %v2616
    %v2717 = vunpack.c.l.b16 %v2617
    %v2718 = vunpack.c.l.b16 %v2618
    %v2719 = vunpack.c.l.b16 %v2619
    %v2720 = vunpack.c.l.b16 %v2620
    %v2721 = vunpack.c.l.b16 %v2621
    %v2722 = vunpack.c.l.b16 %v2622
    %v2723 = vunpack.c.l.b16 %v2623
    %v2724 = vunpack.c.l.b16 %v2624
    %v2725 = vunpack.c.l.b16 %v2625
    %v2726 = vunpack.c.l.b16 %v2626
    %v2727 = vunpack.c.l.b16 %v2627
    %v2728 = vunpack.c.l.b16 %v2628
    %v2729 = vunpack.c.l.b16 %v2629
    %v2730 = vunpack.c.l.b16 %v2630
    %v2731 = vunpack.c.l.b16 %v2631
    %v2732 = vunpack.c.l.b16 %v2632
    %v2733 = vunpack.c.l.b16 %v2633
    %v2734 = vunpack.c.l.b16 %v2634
    %v2735 = vpack.c.b16 %v2688, %v2687
    %v2736 = vpack.c.b16 %v2690, %v2689
    %v2737 = vpack.c.b16 %v2692, %v2691
    %v2738 = vpack.c.b16 %v2694, %v2693
    %v2739 = vpack.c.b16 %v2696, %v2695
    %v2740 = vpack.c.b16 %v2698, %v2697
    %v2741 = vpack.c.b16 %v2700, %v2699
    %v2742 = vpack.c.b16 %v2702, %v2701
    %v2743 = vpack.c.b16 %v2704, %v2703
    %v2744 = vpack.c.b16 %v2706, %v2705
    %v2745 = vpack.c.b16 %v2708, %v2707
    %v2746 = vpack.c.b16 %v2710, %v2709
    %v2747 = vpack.c.b16 %v2712, %v2711
    %v2748 = vpack.c.b16 %v2714, %v2713
    %v2749 = vpack.c.b16 %v2716, %v2715
    %v2750 = vpack.c.b16 %v2718, %v2717
    %v2751 = vpack.c.b16 %v2720, %v2719
    %v2752 = vpack.c.b16 %v2722, %v2721
    %v2753 = vpack.c.b16 %v2724, %v2723
    %v2754 = vpack.c.b16 %v2726, %v2725
    %v2755 = vpack.c.b16 %v2728, %v2727
    %v2756 = vpack.c.b16 %v2730, %v2729
    %v2757 = vpack.c.b16 %v2732, %v2731
    %v2758 = vpack.c.b16 %v2734, %v2733
    %2783 = vmatpush.bf16.msra.mxu0 %v2742
    %2784 = vmatpush.bf16.msra.mxu0 %v2741
    %2785 = vmatpush.bf16.msra.mxu0 %v2740
    %2786 = vmatpush.bf16.msra.mxu0 %v2739
    %2787 = vmatpush.bf16.msra.mxu0 %v2738
    %2788 = vmatpush.bf16.msra.mxu0 %v2737
    %2789 = vmatpush.bf16.msra.mxu0 %v2736
    %2790 = vmatpush.bf16.msra.mxu0 %v2735
    %2791 = vmatmul.bf16.gmra.mxu0 %v2584
    %v2792 = vpop.f32.mrf.mxu0
    %v2793 = vadd.f32 %v2637, %v2792
    %v2794 = vpop.f32.mrf.mxu0
    %2795 = vdwg.mxu0
    %2796 = vmatpush.bf16.msra.mxu0 %v2750
    %2797 = vmatpush.bf16.msra.mxu0 %v2749
    %2798 = vmatpush.bf16.msra.mxu0 %v2748
    %2799 = vmatpush.bf16.msra.mxu0 %v2747
    %2800 = vmatpush.bf16.msra.mxu0 %v2746
    %2801 = vmatpush.bf16.msra.mxu0 %v2745
    %2802 = vmatpush.bf16.msra.mxu0 %v2744
    %2803 = vmatpush.bf16.msra.mxu0 %v2743
    %2804 = vmatmul.bf16.gmra.mxu0 %v2585
    %v2805 = vpop.f32.mrf.mxu0
    %v2806 = vadd.f32 %v2793, %v2805
    %v2807 = vpop.f32.mrf.mxu0
    %2808 = vdwg.mxu0
    %2809 = vmatpush.bf16.msra.mxu0 %v2758
    %2810 = vmatpush.bf16.msra.mxu0 %v2757
    %2811 = vmatpush.bf16.msra.mxu0 %v2756
    %2812 = vmatpush.bf16.msra.mxu0 %v2755
    %2813 = vmatpush.bf16.msra.mxu0 %v2754
    %2814 = vmatpush.bf16.msra.mxu0 %v2753
    %2815 = vmatpush.bf16.msra.mxu0 %v2752
    %2816 = vmatpush.bf16.msra.mxu0 %v2751
    %2817 = vmatmul.bf16.gmra.mxu0 %v2586
    %v2818 = vpop.f32.mrf.mxu0
    %v2819 = vadd.f32 %v2806, %v2818
    %v2820 = vpop.f32.mrf.mxu0
    %2821 = vdwg.mxu0
    %2822 = vst [vmem:[#allocation11] sm:$0xf] %v2819
    %v2823 = vmul.f32 %v2548, %v2548
    %v2824 = vmul.f32 %v2549, %v2549
    %v2825 = vmul.f32 %v2550, %v2550
    %v2826 = vsel %vm929, %v2823, 0.0
    %v2827 = vsel %vm929, %v2824, 0.0
    %v2828 = vadd.f32 %v2826, %v2827
    %v2829 = vsel %vm929, %v2825, 0.0
    %v2830 = vadd.f32 %v2828, %v2829
    %2831 = vadd.xlane.f32.xlu0 %v2830
    %v2832 = vpop.xlane.xlu0 %2831
    %v2833 = vmax.f32 %v2832, 1e-24
    %v2834 = vrsqrt.pop %v2833
    %v2835 = vmul.f32 %v2834, %v2833
    %v2836 = vmul.f32 %v2835, %v2834
    %v2837 = vmul.f32 0.5, %v2836
    %v2838 = vsub.f32 1.5, %v2837
    %v2839 = vmul.f32 %v2834, %v2838
    %vm2840 = vweird.f32 %v2833
    %vm2841 = vweird.f32 %v2834
    %vm2842 = vmor %vm2840, %vm2841
    %v2843 = vsel %vm2842, %v2834, %v2839
    %v2844 = vmul.f32 %v2548, %v2843
    %v2845 = vmul.f32 %v2549, %v2843
    %v2846 = vmul.f32 %v2550, %v2843
    %v2849 = vrot.slane %v2845, 4
    %v2850 = vsel %vm929, %v2844, %v2849
    %2852 = vst [vmem:[#allocation12] sm:$0xff] %v2850
    %2853 = vst [vmem:[#allocation12 + $0x8] sm:$0xf] %v2846
    // Predicated region
    $region58: #{net_forward.1} parent=1 // pred_check
      _
    $region59: #{net_forward.1} parent=1 // pred_check_branch
      %2855 = sbr.rel (0) target = $region61
    $region60: #{net_forward.1} parent=1 // pred_region
      _
    $region61: #{net_forward.1} parent=1 // pred_fallthru
      _
    // Predicated region
    $region62: #{net_forward.1} parent=1 // pred_check
      _
    $region63: #{net_forward.1} parent=1 // pred_check_branch
      %2857 = sbr.rel (0) target = $region65
    $region64: #{net_forward.1} parent=1 // pred_region
      %2859 = vsyncadd [#allocation4], 0
      %s2861 = sshll.u32 [#allocation8], 4
      %s2862 = int_to_ptr.vmem [resolvable:$true] %s2861
      %s2863 = sshll.u32 %s12, 4
      %s2864 = int_to_ptr.hbm [resolvable:$true] %s2863
      %2866 = dma.vmem_to_hbm [thread:$0]  %s2862, 48, %s2864, [#allocation4]
    $region65: #{net_forward.1} parent=1 // pred_fallthru
      _
    // Predicated region
    $region66: #{net_forward.1} parent=1 // pred_check
      _
    $region67: #{net_forward.1} parent=1 // pred_check_branch
      %2868 = sbr.rel (0) target = $region69
    $region68: #{net_forward.1} parent=1 // pred_region
      %2870 = vsyncadd [#allocation10], 0
      %s2872 = sshll.u32 [#allocation9], 4
      %s2873 = int_to_ptr.vmem [resolvable:$true] %s2872
      %s2874 = sshll.u32 %s13, 4
      %s2875 = int_to_ptr.hbm [resolvable:$true] %s2874
      %2877 = dma.vmem_to_hbm [thread:$0]  %s2873, 48, %s2875, [#allocation10]
    $region69: #{net_forward.1} parent=1 // pred_fallthru
      _
    // Predicated region
    $region70: #{net_forward.1} parent=1 // pred_check
      _
    $region71: #{net_forward.1} parent=1 // pred_check_branch
      %2879 = sbr.rel (0) target = $region73
    $region72: #{net_forward.1} parent=1 // pred_region
      %2881 = vsyncadd [#allocation10], 0
      %s2883 = sshll.u32 [#allocation11], 4
      %s2884 = int_to_ptr.vmem [resolvable:$true] %s2883
      %s2885 = sshll.u32 %s14, 4
      %s2886 = int_to_ptr.hbm [resolvable:$true] %s2885
      %2888 = dma.vmem_to_hbm [thread:$0]  %s2884, 64, %s2886, [#allocation10]
    $region73: #{net_forward.1} parent=1 // pred_fallthru
      _
    // Predicated region
    $region74: #{net_forward.1} parent=1 // pred_check
      _
    $region75: #{net_forward.1} parent=1 // pred_check_branch
      %2890 = sbr.rel (0) target = $region77
    $region76: #{net_forward.1} parent=1 // pred_region
      %2892 = vsyncadd [#allocation13], 0
      %s2894 = sshll.u32 [#allocation12], 4
      %s2895 = int_to_ptr.vmem [resolvable:$true] %s2894
      %s2896 = sshll.u32 %s15, 4
      %s2897 = int_to_ptr.hbm [resolvable:$true] %s2896
      %2899 = dma.vmem_to_hbm [thread:$0]  %s2895, 192, %s2897, [#allocation13]
    $region77: #{net_forward.1} parent=1 // pred_fallthru
      _
    // Predicated region
    $region78: #{net_forward.1} parent=1 // pred_check
      _
    $region79: #{net_forward.1} parent=1 // pred_check_branch
      %2901 = sbr.rel (0) target = $region81
    $region80: #{net_forward.1} parent=1 // pred_region
      _
    $region81: #{net_forward.1} parent=1 // pred_fallthru
      _
    // Predicated region
    $region82: #{net_forward.1} parent=1 // pred_check
      _
    $region83: #{net_forward.1} parent=1 // pred_check_branch
      %2903 = sbr.rel (0) target = $region85
    $region84: #{net_forward.1} parent=1 // pred_region
      %2905 = dma.done [#allocation4], 48
    $region85: #{net_forward.1} parent=1 // pred_fallthru
      _
    // Predicated region
    $region86: #{net_forward.1} parent=1 // pred_check
      _
    $region87: #{net_forward.1} parent=1 // pred_check_branch
      %2907 = sbr.rel (0) target = $region89
    $region88: #{net_forward.1} parent=1 // pred_region
      %2909 = dma.done [#allocation10], 48
    $region89: #{net_forward.1} parent=1 // pred_fallthru
      _
    // Predicated region
    $region90: #{net_forward.1} parent=1 // pred_check
      _
    $region91: #{net_forward.1} parent=1 // pred_check_branch
      %2911 = sbr.rel (0) target = $region93
    $region92: #{net_forward.1} parent=1 // pred_region
      %2913 = dma.done [#allocation10], 64
    $region93: #{net_forward.1} parent=1 // pred_fallthru
      _
    // Predicated region
    $region94: #{net_forward.1} parent=1 // pred_check
      _
    $region95: #{net_forward.1} parent=1 // pred_check_branch
      %2915 = sbr.rel (0) target = $region97
    $region96: #{net_forward.1} parent=1 // pred_region
      %2917 = dma.done [#allocation13], 192
    $region97: #{net_forward.1} parent=1 // pred_fallthru
      _
    %2918 = vsyncpa [#allocation3], 1
    %2919 = vsyncpa [#allocation6], 1
    %2920 = vsyncpa [#allocation4], 1
    %2921 = vsyncpa [#allocation10], 1
    %2922 = vsyncpa [#allocation13], 1

</llo_original>
